<compile_context>
chip_gen: v7x
topology: tpu7x:2x2x1
jax: 0.10.0
libtpu: 0.0.40
codegen_flags: <defaults>
</compile_context>

<pallas_src>
import functools

import numpy as np

import jax
import jax.numpy as jnp
from jax import lax
from jax.experimental import pallas as pl
from jax.experimental.pallas import tpu as pltpu


LANE = 128


def _round_up(x: int, m: int) -> int:
    return (x + m - 1) // m * m


# -----------------------------------------------------------------------------
# Fused kernel: (conv1+relu) -> (conv2+relu) -> (conv3+relu) -> dense -> heads
# Each conv is a matmul against its precomputed, lane-padded dense operator.
# -----------------------------------------------------------------------------
def _encoder_fused_kernel(x_ref, w1_ref, b1_ref, w2_ref, b2_ref, w3_ref, b3_ref,
                          wd_ref, bd_ref, mus_ref, lvs_ref, out_ref,
                          *, hpad: int, precision):
    dot = functools.partial(jnp.dot, preferred_element_type=jnp.float32,
                            precision=precision)

    a = x_ref[...]                                               # (TB, K0P)
    a = jnp.maximum(dot(a, w1_ref[...]) + b1_ref[...], 0.0)      # conv1 + ReLU
    a = jnp.maximum(dot(a, w2_ref[...]) + b2_ref[...], 0.0)      # conv2 + ReLU
    a = jnp.maximum(dot(a, w3_ref[...]) + b3_ref[...], 0.0)      # conv3 + ReLU
    h = dot(a, wd_ref[...]) + bd_ref[...]                        # (TB, 2*hpad)

    # numerically stable sigmoid: exp on the EUP slot, no inf intermediates
    z = jnp.exp(-jnp.abs(h))
    r = 1.0 / (1.0 + z)
    sig = jnp.where(h >= 0.0, r, z * r)

    # lanes [0, hpad): mu head, lanes [hpad, 2*hpad): logv head (128-aligned)
    # mus_ref = (2*mu_scale, mu_scale), pre-clamped in the wrapper (SMEM).
    out_ref[:, :hpad] = (sig[:, :hpad] * mus_ref[0] - mus_ref[1]).astype(out_ref.dtype)
    out_ref[:, hpad:] = jnp.log(sig[:, hpad:] * lvs_ref[...] + 1e-8).astype(out_ref.dtype)


# -----------------------------------------------------------------------------
# Single pallas_call wrapper (batch-tiled grid, weights resident)
# -----------------------------------------------------------------------------
def _choose_batch_tiling(batch: int):
    tb = 128                         # 128 rows fill the MXU / amortize grid cost
    if batch < tb:
        tb = _round_up(max(batch, 1), 8)     # sublane multiple, single block
        return tb, tb
    return tb, _round_up(batch, tb)          # >=2 blocks for v7x's 2 TCs


@functools.partial(jax.jit, static_argnames=("hidden_dim", "precision"))
def encoder_forward(packed, x_nchw, *, hidden_dim,
                    precision=lax.Precision.DEFAULT):
    B = x_nchw.shape[0]
    k0p = packed["w1"].shape[0]
    nd = packed["w_dense"].shape[1]
    hpad = nd // 2

    # NCHW flatten == torch's x.view(B, -1); the packed conv operators consume
    # / produce (C, H, W)-flat vectors so no transpose is needed.
    x_flat = x_nchw.reshape(B, -1)
    k0 = x_flat.shape[1]

    TB, BP = _choose_batch_tiling(B)
    nb = BP // TB
    x_flat = jnp.pad(x_flat, ((0, BP - B), (0, k0p - k0)))

    # Hoisted (functional) clamp of the learnable scales + symmetric-sigmoid
    # constants; logv_scale padded to the lane-dense width with 1.0.
    ms = jnp.clip(packed["mu_scale"].astype(jnp.float32), 1.0, 100.0)
    mus = jnp.stack([2.0 * ms, ms]).astype(jnp.float32)           # (2,) -> SMEM
    lvs = jnp.clip(packed["logv_scale"].reshape(1, -1).astype(jnp.float32),
                   1.0, 100.0)
    lvs = jnp.pad(lvs, ((0, 0), (0, hpad - hidden_dim)), constant_values=1.0)

    def wspec(shape):
        # whole-array block, constant block index -> fetched once, stays resident
        return pl.BlockSpec(shape, lambda i: (0, 0))

    kernel = functools.partial(_encoder_fused_kernel, hpad=hpad,
                               precision=precision)

    out = pl.pallas_call(
        kernel,
        grid=(nb,),
        in_specs=[
            pl.BlockSpec((TB, k0p), lambda i: (i, 0)),             # x tile
            wspec(packed["w1"].shape), wspec(packed["b1"].shape),  # conv1
            wspec(packed["w2"].shape), wspec(packed["b2"].shape),  # conv2
            wspec(packed["w3"].shape), wspec(packed["b3"].shape),  # conv3
            wspec(packed["w_dense"].shape), wspec(packed["b_dense"].shape),
            pl.BlockSpec(memory_space=pltpu.MemorySpace.SMEM),     # (2*ms, ms)
            wspec((1, hpad)),                                      # logv_scale
        ],
        out_specs=pl.BlockSpec((TB, nd), lambda i: (i, 0)),        # mu|logv slab
        out_shape=jax.ShapeDtypeStruct((BP, nd), jnp.float32),
        compiler_params=pltpu.CompilerParams(
            dimension_semantics=("parallel",)),    # v7x: shard batch tiles
    )(x_flat,
      packed["w1"], packed["b1"], packed["w2"], packed["b2"],
      packed["w3"], packed["b3"], packed["w_dense"], packed["b_dense"],
      mus, lvs)

    mu = out[:B, :hidden_dim]
    logv = out[:B, hpad:hpad + hidden_dim]
    return mu, logv


# -----------------------------------------------------------------------------
# Parameter init (torch layouts)
# -----------------------------------------------------------------------------
def init_encoder_params(key, *, hidden_dim, input_dims, input_size, expand_dim):
    latent = input_size >> 3
    ks = jax.random.split(key, 8)

    def kaiming(k, shape, fan_out):
        return (2.0 / fan_out) ** 0.5 * jax.random.normal(k, shape, jnp.float32)

    # conv weights in torch OIHW layout: (Cout, Cin, KH, KW)
    w1 = kaiming(ks[0], (expand_dim, input_dims, 3, 3), fan_out=expand_dim * 9)
    w2 = kaiming(ks[1], (expand_dim, expand_dim, 3, 3), fan_out=expand_dim * 9)
    w3 = kaiming(ks[2], (expand_dim, expand_dim, 3, 3), fan_out=expand_dim * 9)
    b1 = 0.01 * jax.random.normal(ks[3], (expand_dim,), jnp.float32)
    b2 = 0.01 * jax.random.normal(ks[4], (expand_dim,), jnp.float32)
    b3 = 0.01 * jax.random.normal(ks[5], (expand_dim,), jnp.float32)

    dense_in = latent * latent * expand_dim
    dense_out = 2 * hidden_dim
    # torch Linear weight is (out, in); store the matmul form (in, out)
    w_dense = kaiming(ks[6], (dense_in, dense_out), fan_out=dense_out)
    b_dense = 0.01 * jax.random.normal(ks[7], (dense_out,), jnp.float32)

    mu_scale = jnp.array(10.0, dtype=jnp.float32)
    logv_scale = jnp.ones((1, hidden_dim), jnp.float32) * 10.0

    return dict(w1=w1, b1=b1, w2=w2, b2=b2, w3=w3, b3=b3,
                w_dense=w_dense, b_dense=b_dense,
                mu_scale=mu_scale, logv_scale=logv_scale)


# -----------------------------------------------------------------------------
# One-time weight preprocessing: conv -> dense operator, lane padding
# -----------------------------------------------------------------------------
def conv_s2p1_as_matrix(w_oihw, H, W):
    """Exact dense matrix of a 3x3 / stride-2 / pad-1 conv acting on
    NCHW-flattened vectors: shape (Cin*H*W, Cout*Ho*Wo). Returns np.float32."""
    w = np.asarray(jax.device_get(w_oihw), dtype=np.float32)
    Cout, Cin, KH, KW = w.shape
    stride, pad = 2, 1
    Ho = (H + 2 * pad - KH) // stride + 1
    Wo = (W + 2 * pad - KW) // stride + 1
    mat = np.zeros((Cin * H * W, Cout * Ho * Wo), dtype=np.float32)
    ci_rows = np.arange(Cin) * (H * W)
    co_cols = np.arange(Cout) * (Ho * Wo)
    for ho in range(Ho):
        for wo in range(Wo):
            col = ho * Wo + wo
            for kh in range(KH):
                hi = stride * ho + kh - pad
                if hi < 0 or hi >= H:
                    continue
                for kw in range(KW):
                    wi = stride * wo + kw - pad
                    if wi < 0 or wi >= W:
                        continue
                    mat[np.ix_(ci_rows + hi * W + wi, co_cols + col)] = \
                        w[:, :, kh, kw].T          # (Cin, Cout)
    return mat


def pack_encoder_params(raw, *, input_size, hidden_dim):
    """Conv -> dense linear operator, flatten folded into the dense weight,
    every matmul N dim zero-padded to a multiple of 128 lanes; dense output
    split so mu occupies lanes [0, HPAD) and logv lanes [HPAD, 2*HPAD)."""
    h1 = input_size
    h2, h3, h4 = h1 // 2, h1 // 4, h1 // 8

    w1 = np.asarray(jax.device_get(raw["w1"]))
    expand_dim, input_dims = w1.shape[0], w1.shape[1]

    k0 = input_dims * h1 * h1
    n1 = expand_dim * h2 * h2
    n2 = expand_dim * h3 * h3
    n3 = expand_dim * h4 * h4
    hpad = _round_up(hidden_dim, LANE)
    k0p, n1p, n2p, n3p = (_round_up(v, LANE) for v in (k0, n1, n2, n3))

    def pad_to(m, rows, cols):
        out = np.zeros((rows, cols), np.float32)
        out[: m.shape[0], : m.shape[1]] = m
        return jnp.asarray(out)

    w1m = conv_s2p1_as_matrix(raw["w1"], h1, h1)                  # (k0, n1)
    w2m = conv_s2p1_as_matrix(raw["w2"], h2, h2)                  # (n1, n2)
    w3m = conv_s2p1_as_matrix(raw["w3"], h3, h3)                  # (n2, n3)

    b1 = np.repeat(np.asarray(jax.device_get(raw["b1"])), h2 * h2)[None, :]
    b2 = np.repeat(np.asarray(jax.device_get(raw["b2"])), h3 * h3)[None, :]
    b3 = np.repeat(np.asarray(jax.device_get(raw["b3"])), h4 * h4)[None, :]

    wd = np.asarray(jax.device_get(raw["w_dense"]))               # (n3, 2*hidden)
    bd = np.asarray(jax.device_get(raw["b_dense"]))               # (2*hidden,)
    wd_pad = np.zeros((n3p, 2 * hpad), np.float32)
    wd_pad[:n3, :hidden_dim] = wd[:, :hidden_dim]                 # mu logits
    wd_pad[:n3, hpad:hpad + hidden_dim] = wd[:, hidden_dim:]      # logv logits
    bd_pad = np.zeros((1, 2 * hpad), np.float32)
    bd_pad[0, :hidden_dim] = bd[:hidden_dim]
    bd_pad[0, hpad:hpad + hidden_dim] = bd[hidden_dim:]

    return dict(
        w1=pad_to(w1m, k0p, n1p), b1=pad_to(b1, 1, n1p),
        w2=pad_to(w2m, n1p, n2p), b2=pad_to(b2, 1, n2p),
        w3=pad_to(w3m, n2p, n3p), b3=pad_to(b3, 1, n3p),
        w_dense=jnp.asarray(wd_pad), b_dense=jnp.asarray(bd_pad),
        mu_scale=raw["mu_scale"],          # scalar; clamped in the wrapper
        logv_scale=raw["logv_scale"],      # (1, hidden); clamped+padded in wrapper
    )


# -----------------------------------------------------------------------------
# Pure-JAX reference (XLA conv) for correctness checks
# -----------------------------------------------------------------------------
def encoder_reference(raw, x_nchw, *, hidden_dim):
    mu_scale = jnp.clip(raw["mu_scale"], 1.0, 100.0)
    logv_scale = jnp.clip(raw["logv_scale"], 1.0, 100.0)
    a = x_nchw
    for i in (1, 2, 3):
        a = lax.conv_general_dilated(
            a, raw[f"w{i}"], window_strides=(2, 2), padding=((1, 1), (1, 1)),
            dimension_numbers=("NCHW", "OIHW", "NCHW"),
            precision=lax.Precision.HIGHEST)
        a = jnp.maximum(a + raw[f"b{i}"].reshape(1, -1, 1, 1), 0.0)
    h = jnp.dot(a.reshape(a.shape[0], -1), raw["w_dense"],
                precision=lax.Precision.HIGHEST) + raw["b_dense"]
    mu = (2.0 * jax.nn.sigmoid(h[:, :hidden_dim]) - 1.0) * mu_scale
    logv = jnp.log(jax.nn.sigmoid(h[:, hidden_dim:]) * logv_scale + 1e-8)
    return mu, logv


# -----------------------------------------------------------------------------
if __name__ == "__main__":
    # small config consistent with the module: latent_size = input_size >> 3
    BATCH = 2
    INPUT_DIMS = 3
    INPUT_SIZE = 16      # -> latent spatial size 2
    EXPAND_DIM = 8
    HIDDEN_DIM = 16

    key = jax.random.PRNGKey(0)
    k_params, k_x = jax.random.split(key)

    raw = init_encoder_params(k_params, hidden_dim=HIDDEN_DIM,
                              input_dims=INPUT_DIMS, input_size=INPUT_SIZE,
                              expand_dim=EXPAND_DIM)
    packed = pack_encoder_params(raw, input_size=INPUT_SIZE,
                                 hidden_dim=HIDDEN_DIM)

    x = jax.random.normal(k_x, (BATCH, INPUT_DIMS, INPUT_SIZE, INPUT_SIZE),
                          dtype=jnp.float32)

    # production setting: DEFAULT (single-pass bf16 MXU) precision
    mu, logv = encoder_forward(packed, x, hidden_dim=HIDDEN_DIM)
    mu, logv = jax.block_until_ready((mu, logv))

    assert mu.shape == (BATCH, HIDDEN_DIM)
    assert logv.shape == (BATCH, HIDDEN_DIM)
    assert bool(jnp.all(jnp.isfinite(mu))) and bool(jnp.all(jnp.isfinite(logv)))
    # mu bounded by +-mu_scale (=10), per SigmoidSymmetric * scale
    assert bool(jnp.all(jnp.abs(mu) <= 10.0 + 1e-4))

    mu_ref, logv_ref = encoder_reference(raw, x, hidden_dim=HIDDEN_DIM)
    mu_ref, logv_ref = jax.block_until_ready((mu_ref, logv_ref))

    # DEFAULT precision (bf16 MXU passes, K up to 768) vs f32 reference:
    # loose tolerance — still ~100x tighter than any structural error.
    np.testing.assert_allclose(np.asarray(mu), np.asarray(mu_ref),
                               rtol=2e-2, atol=8e-2)
    np.testing.assert_allclose(np.asarray(logv), np.asarray(logv_ref),
                               rtol=2e-2, atol=5e-2)

    # HIGHEST-precision pass: tight check of the conv folding / fused math.
    mu_hi, logv_hi = encoder_forward(packed, x, hidden_dim=HIDDEN_DIM,
                                     precision=lax.Precision.HIGHEST)
    mu_hi, logv_hi = jax.block_until_ready((mu_hi, logv_hi))
    np.testing.assert_allclose(np.asarray(mu_hi), np.asarray(mu_ref),
                               rtol=2e-3, atol=2e-3)
    np.testing.assert_allclose(np.asarray(logv_hi), np.asarray(logv_ref),
                               rtol=2e-3, atol=2e-3)

    print("KERNEL_OK")
</pallas_src>

<mosaic_0001>
module attributes {stable_mosaic.version = 11 : i64} {
  func.func @_encoder_fused_kernel(%arg0: i32, %arg1: memref<8x768xf32, #tpu.memory_space<vmem>>, %arg2: memref<768x512xf32, #tpu.memory_space<vmem>>, %arg3: memref<1x512xf32, #tpu.memory_space<vmem>>, %arg4: memref<512x128xf32, #tpu.memory_space<vmem>>, %arg5: memref<1x128xf32, #tpu.memory_space<vmem>>, %arg6: memref<128x128xf32, #tpu.memory_space<vmem>>, %arg7: memref<1x128xf32, #tpu.memory_space<vmem>>, %arg8: memref<128x256xf32, #tpu.memory_space<vmem>>, %arg9: memref<1x256xf32, #tpu.memory_space<vmem>>, %arg10: memref<2xf32, #tpu.memory_space<smem>>, %arg11: memref<1x128xf32, #tpu.memory_space<vmem>>, %arg12: memref<8x256xf32, #tpu.memory_space<vmem>>) attributes {dimension_semantics = [#tpu.dimension_semantics<parallel>], iteration_bounds = array<i64: 1>, scalar_prefetch = 0 : i64, scratch_operands = 0 : i64, tpu.core_type = #tpu.core_type<tc>, window_params = [{transform_indices = @transform_0, window_bounds = array<i64: 8, 768>}, {pipeline_mode = #tpu.pipeline_mode<synchronous>, transform_indices = @transform_1, window_bounds = array<i64: 768, 512>}, {pipeline_mode = #tpu.pipeline_mode<synchronous>, transform_indices = @transform_2, window_bounds = array<i64: 1, 512>}, {pipeline_mode = #tpu.pipeline_mode<synchronous>, transform_indices = @transform_3, window_bounds = array<i64: 512, 128>}, {pipeline_mode = #tpu.pipeline_mode<synchronous>, transform_indices = @transform_4, window_bounds = array<i64: 1, 128>}, {pipeline_mode = #tpu.pipeline_mode<synchronous>, transform_indices = @transform_5, window_bounds = array<i64: 128, 128>}, {pipeline_mode = #tpu.pipeline_mode<synchronous>, transform_indices = @transform_6, window_bounds = array<i64: 1, 128>}, {pipeline_mode = #tpu.pipeline_mode<synchronous>, transform_indices = @transform_7, window_bounds = array<i64: 128, 256>}, {pipeline_mode = #tpu.pipeline_mode<synchronous>, transform_indices = @transform_8, window_bounds = array<i64: 1, 256>}, {transform_indices = @transform_9, window_bounds = array<i64: 2>}, {pipeline_mode = #tpu.pipeline_mode<synchronous>, transform_indices = @transform_10, window_bounds = array<i64: 1, 128>}, {transform_indices = @transform_11, window_bounds = array<i64: 8, 256>}]} {
    %c0 = arith.constant 0 : index
    %c0_0 = arith.constant 0 : index
    %0 = vector.load %arg1[%c0, %c0_0] : memref<8x768xf32, #tpu.memory_space<vmem>>, vector<8x768xf32>
    %c0_1 = arith.constant 0 : index
    %c0_2 = arith.constant 0 : index
    %1 = vector.load %arg2[%c0_1, %c0_2] : memref<768x512xf32, #tpu.memory_space<vmem>>, vector<768x512xf32>
    %cst = arith.constant dense<0.000000e+00> : vector<8x512xf32>
    %2 = tpu.matmul %0, %1, %cst {dimension_numbers = #tpu.dot_dimension_numbers<[1], [0], [0], [1], [0, 0, 1, 1], [], []>} : vector<8x768xf32>, vector<768x512xf32>, vector<8x512xf32> -> vector<8x512xf32>
    %c0_3 = arith.constant 0 : index
    %c0_4 = arith.constant 0 : index
    %3 = vector.load %arg3[%c0_3, %c0_4] : memref<1x512xf32, #tpu.memory_space<vmem>>, vector<1x512xf32>
    %4 = vector.broadcast %3 : vector<1x512xf32> to vector<8x512xf32>
    %5 = arith.addf %2, %4 : vector<8x512xf32>
    %cst_5 = arith.constant 0.000000e+00 : f32
    %6 = vector.broadcast %cst_5 : f32 to vector<8x512xf32>
    %7 = arith.maximumf %5, %6 : vector<8x512xf32>
    %c0_6 = arith.constant 0 : index
    %c0_7 = arith.constant 0 : index
    %8 = vector.load %arg4[%c0_6, %c0_7] : memref<512x128xf32, #tpu.memory_space<vmem>>, vector<512x128xf32>
    %cst_8 = arith.constant dense<0.000000e+00> : vector<8x128xf32>
    %9 = tpu.matmul %7, %8, %cst_8 {dimension_numbers = #tpu.dot_dimension_numbers<[1], [0], [0], [1], [0, 0, 1, 1], [], []>} : vector<8x512xf32>, vector<512x128xf32>, vector<8x128xf32> -> vector<8x128xf32>
    %c0_9 = arith.constant 0 : index
    %c0_10 = arith.constant 0 : index
    %10 = vector.load %arg5[%c0_9, %c0_10] : memref<1x128xf32, #tpu.memory_space<vmem>>, vector<1x128xf32>
    %11 = vector.broadcast %10 : vector<1x128xf32> to vector<8x128xf32>
    %12 = arith.addf %9, %11 : vector<8x128xf32>
    %cst_11 = arith.constant 0.000000e+00 : f32
    %13 = vector.broadcast %cst_11 : f32 to vector<8x128xf32>
    %14 = arith.maximumf %12, %13 : vector<8x128xf32>
    %c0_12 = arith.constant 0 : index
    %c0_13 = arith.constant 0 : index
    %15 = vector.load %arg6[%c0_12, %c0_13] : memref<128x128xf32, #tpu.memory_space<vmem>>, vector<128x128xf32>
    %cst_14 = arith.constant dense<0.000000e+00> : vector<8x128xf32>
    %16 = tpu.matmul %14, %15, %cst_14 {dimension_numbers = #tpu.dot_dimension_numbers<[1], [0], [0], [1], [0, 0, 1, 1], [], []>} : vector<8x128xf32>, vector<128x128xf32>, vector<8x128xf32> -> vector<8x128xf32>
    %c0_15 = arith.constant 0 : index
    %c0_16 = arith.constant 0 : index
    %17 = vector.load %arg7[%c0_15, %c0_16] : memref<1x128xf32, #tpu.memory_space<vmem>>, vector<1x128xf32>
    %18 = vector.broadcast %17 : vector<1x128xf32> to vector<8x128xf32>
    %19 = arith.addf %16, %18 : vector<8x128xf32>
    %cst_17 = arith.constant 0.000000e+00 : f32
    %20 = vector.broadcast %cst_17 : f32 to vector<8x128xf32>
    %21 = arith.maximumf %19, %20 : vector<8x128xf32>
    %c0_18 = arith.constant 0 : index
    %c0_19 = arith.constant 0 : index
    %22 = vector.load %arg8[%c0_18, %c0_19] : memref<128x256xf32, #tpu.memory_space<vmem>>, vector<128x256xf32>
    %cst_20 = arith.constant dense<0.000000e+00> : vector<8x256xf32>
    %23 = tpu.matmul %21, %22, %cst_20 {dimension_numbers = #tpu.dot_dimension_numbers<[1], [0], [0], [1], [0, 0, 1, 1], [], []>} : vector<8x128xf32>, vector<128x256xf32>, vector<8x256xf32> -> vector<8x256xf32>
    %c0_21 = arith.constant 0 : index
    %c0_22 = arith.constant 0 : index
    %24 = vector.load %arg9[%c0_21, %c0_22] : memref<1x256xf32, #tpu.memory_space<vmem>>, vector<1x256xf32>
    %25 = vector.broadcast %24 : vector<1x256xf32> to vector<8x256xf32>
    %26 = arith.addf %23, %25 : vector<8x256xf32>
    %27 = math.absf %26 : vector<8x256xf32>
    %cst_23 = arith.constant 0.000000e+00 : f32
    %28 = vector.broadcast %cst_23 : f32 to vector<8x256xf32>
    %29 = arith.subf %28, %27 : vector<8x256xf32>
    %30 = math.exp %29 : vector<8x256xf32>
    %cst_24 = arith.constant 1.000000e+00 : f32
    %31 = vector.broadcast %cst_24 : f32 to vector<8x256xf32>
    %32 = arith.addf %31, %30 : vector<8x256xf32>
    %cst_25 = arith.constant 1.000000e+00 : f32
    %33 = vector.broadcast %cst_25 : f32 to vector<8x256xf32>
    %34 = arith.divf %33, %32 : vector<8x256xf32>
    %cst_26 = arith.constant 0.000000e+00 : f32
    %35 = vector.broadcast %cst_26 : f32 to vector<8x256xf32>
    %36 = arith.cmpf oge, %26, %35 : vector<8x256xf32>
    %37 = arith.mulf %30, %34 : vector<8x256xf32>
    %38 = arith.select %36, %34, %37 : vector<8x256xi1>, vector<8x256xf32>
    %39 = vector.extract_strided_slice %38 {offsets = [0, 0], sizes = [8, 128], strides = [1, 1]} : vector<8x256xf32> to vector<8x128xf32>
    %c0_27 = arith.constant 0 : index
    %40 = memref.load %arg10[%c0_27] : memref<2xf32, #tpu.memory_space<smem>>
    %41 = vector.broadcast %40 : f32 to vector<8x128xf32>
    %42 = arith.mulf %39, %41 : vector<8x128xf32>
    %c1 = arith.constant 1 : index
    %43 = memref.load %arg10[%c1] : memref<2xf32, #tpu.memory_space<smem>>
    %44 = vector.broadcast %43 : f32 to vector<8x128xf32>
    %45 = arith.subf %42, %44 : vector<8x128xf32>
    %c0_28 = arith.constant 0 : index
    %c0_29 = arith.constant 0 : index
    %46 = vector.load %arg12[%c0_28, %c0_29] : memref<8x256xf32, #tpu.memory_space<vmem>>, vector<8x128xf32>
    tpu.vector_store %arg12[%c0_28, %c0_29], %45 {strides = array<i32>} : memref<8x256xf32, #tpu.memory_space<vmem>>, vector<8x128xf32>,
    %47 = vector.extract_strided_slice %38 {offsets = [0, 128], sizes = [8, 128], strides = [1, 1]} : vector<8x256xf32> to vector<8x128xf32>
    %c0_30 = arith.constant 0 : index
    %c0_31 = arith.constant 0 : index
    %48 = vector.load %arg11[%c0_30, %c0_31] : memref<1x128xf32, #tpu.memory_space<vmem>>, vector<1x128xf32>
    %49 = vector.broadcast %48 : vector<1x128xf32> to vector<8x128xf32>
    %50 = arith.mulf %47, %49 : vector<8x128xf32>
    %cst_32 = arith.constant 9.99999993E-9 : f32
    %51 = vector.broadcast %cst_32 : f32 to vector<8x128xf32>
    %52 = arith.addf %50, %51 : vector<8x128xf32>
    %53 = math.log %52 : vector<8x128xf32>
    %c0_33 = arith.constant 0 : index
    %c128 = arith.constant 128 : index
    %54 = vector.load %arg12[%c0_33, %c128] : memref<8x256xf32, #tpu.memory_space<vmem>>, vector<8x128xf32>
    tpu.vector_store %arg12[%c0_33, %c128], %53 {strides = array<i32>} : memref<8x256xf32, #tpu.memory_space<vmem>>, vector<8x128xf32>,
    return
  }
  func.func @transform_0(%arg0: i32) -> (i32, i32) {
    %c0_i32 = arith.constant 0 : i32
    %c0_i32_0 = arith.constant 0 : i32
    return %arg0, %c0_i32 : i32, i32
  }
  func.func @transform_1(%arg0: i32) -> (i32, i32) {
    %c0_i32 = arith.constant 0 : i32
    %c0_i32_0 = arith.constant 0 : i32
    %c0_i32_1 = arith.constant 0 : i32
    return %c0_i32, %c0_i32_0 : i32, i32
  }
  func.func @transform_2(%arg0: i32) -> (i32, i32) {
    %c0_i32 = arith.constant 0 : i32
    %c0_i32_0 = arith.constant 0 : i32
    %c0_i32_1 = arith.constant 0 : i32
    return %c0_i32, %c0_i32_0 : i32, i32
  }
  func.func @transform_3(%arg0: i32) -> (i32, i32) {
    %c0_i32 = arith.constant 0 : i32
    %c0_i32_0 = arith.constant 0 : i32
    %c0_i32_1 = arith.constant 0 : i32
    return %c0_i32, %c0_i32_0 : i32, i32
  }
  func.func @transform_4(%arg0: i32) -> (i32, i32) {
    %c0_i32 = arith.constant 0 : i32
    %c0_i32_0 = arith.constant 0 : i32
    %c0_i32_1 = arith.constant 0 : i32
    return %c0_i32, %c0_i32_0 : i32, i32
  }
  func.func @transform_5(%arg0: i32) -> (i32, i32) {
    %c0_i32 = arith.constant 0 : i32
    %c0_i32_0 = arith.constant 0 : i32
    %c0_i32_1 = arith.constant 0 : i32
    return %c0_i32, %c0_i32_0 : i32, i32
  }
  func.func @transform_6(%arg0: i32) -> (i32, i32) {
    %c0_i32 = arith.constant 0 : i32
    %c0_i32_0 = arith.constant 0 : i32
    %c0_i32_1 = arith.constant 0 : i32
    return %c0_i32, %c0_i32_0 : i32, i32
  }
  func.func @transform_7(%arg0: i32) -> (i32, i32) {
    %c0_i32 = arith.constant 0 : i32
    %c0_i32_0 = arith.constant 0 : i32
    %c0_i32_1 = arith.constant 0 : i32
    return %c0_i32, %c0_i32_0 : i32, i32
  }
  func.func @transform_8(%arg0: i32) -> (i32, i32) {
    %c0_i32 = arith.constant 0 : i32
    %c0_i32_0 = arith.constant 0 : i32
    %c0_i32_1 = arith.constant 0 : i32
    return %c0_i32, %c0_i32_0 : i32, i32
  }
  func.func @transform_9(%arg0: i32) -> i32 {
    %c0_i32 = arith.constant 0 : i32
    %c0_i32_0 = arith.constant 0 : i32
    return %c0_i32 : i32
  }
  func.func @transform_10(%arg0: i32) -> (i32, i32) {
    %c0_i32 = arith.constant 0 : i32
    %c0_i32_0 = arith.constant 0 : i32
    %c0_i32_1 = arith.constant 0 : i32
    return %c0_i32, %c0_i32_0 : i32, i32
  }
  func.func @transform_11(%arg0: i32) -> (i32, i32) {
    %c0_i32 = arith.constant 0 : i32
    %c0_i32_0 = arith.constant 0 : i32
    return %arg0, %c0_i32 : i32, i32
  }
}

</mosaic_0001>

<llo_original>
// kernel: encoder_forward.1
$region0: #{encoder_forward.1}
  #allocation0 [shape = 'u32[]', space=smem, size = 0x4, offset = 0x4, fixed_abs, tag = 'smem constant byte address 0x4 - core index']
  #allocation1 [shape = 'u32[144,128]{1,0:T(1,128)}', space=vmem, size = 0x12000, scoped, tag = 'internal scratch']
  %s0 = inlined_call_operand.vmem [shape: f32[8,768], index: 0, kind: input, shape index: {}]
  %s1 = inlined_call_operand.hbm [shape: f32[768,512], index: 1, kind: input, shape index: {}]
  %s2 = inlined_call_operand.hbm [shape: f32[1,512], index: 2, kind: input, shape index: {}]
  %s3 = inlined_call_operand.hbm [shape: f32[512,128], index: 3, kind: input, shape index: {}]
  %s4 = inlined_call_operand.hbm [shape: f32[1,128], index: 4, kind: input, shape index: {}]
  %s5 = inlined_call_operand.hbm [shape: f32[128,128], index: 5, kind: input, shape index: {}]
  %s6 = inlined_call_operand.hbm [shape: f32[1,128], index: 6, kind: input, shape index: {}]
  %s7 = inlined_call_operand.hbm [shape: f32[128,256], index: 7, kind: input, shape index: {}]
  %s8 = inlined_call_operand.hbm [shape: f32[1,256], index: 8, kind: input, shape index: {}]
  %s9 = inlined_call_operand.vmem [shape: f32[2], index: 9, kind: input, shape index: {}]
  %s10 = inlined_call_operand.vmem [shape: f32[1,128], index: 10, kind: input, shape index: {}]
  %s11 = inlined_call_operand.vmem [shape: f32[8,256], index: 11, kind: output, shape index: {}]
  %s12 = sld [smem:[#allocation0]]
  $region90: #{encoder_forward.1} parent=0
    _
  %s14 = ssub.s32 1, %s12
  %s15 = scalar_select 0, %s14, %s12
  $region1: #{encoder_forward.1} parent=0
    #allocation2 [shape = 'u8[1572864]{0}', space=vmem, size = 0x180000, scoped, tag = 'input window, operand 1, single buffered']
    #allocation3 [shape = 's32[1]{0}', space=sflag, size = 0x4, scoped, tag = 'scoped memory for encoder_forward.1']
    #allocation4 [shape = 's32[1]{0}', space=sflag, size = 0x4, scoped, tag = 'scoped memory for encoder_forward.1']
    #allocation5 [shape = 'u8[2048]{0}', space=vmem, size = 0x800, scoped, tag = 'input window, operand 2, single buffered']
    #allocation6 [shape = 's32[1]{0}', space=sflag, size = 0x4, scoped, tag = 'scoped memory for encoder_forward.1']
    #allocation7 [shape = 'u8[262144]{0}', space=vmem, size = 0x40000, scoped, tag = 'input window, operand 3, single buffered']
    #allocation8 [shape = 'u8[512]{0}', space=vmem, size = 0x400, scoped, tag = 'input window, operand 4, single buffered']
    #allocation9 [shape = 's32[1]{0}', space=sflag, size = 0x4, scoped, tag = 'scoped memory for encoder_forward.1']
    #allocation10 [shape = 'u8[65536]{0}', space=vmem, size = 0x10000, scoped, tag = 'input window, operand 5, single buffered']
    #allocation11 [shape = 'u8[512]{0}', space=vmem, size = 0x400, scoped, tag = 'input window, operand 6, single buffered']
    #allocation12 [shape = 's32[1]{0}', space=sflag, size = 0x4, scoped, tag = 'scoped memory for encoder_forward.1']
    #allocation13 [shape = 'u8[131072]{0}', space=vmem, size = 0x20000, scoped, tag = 'input window, operand 7, single buffered']
    #allocation14 [shape = 'u8[1024]{0}', space=vmem, size = 0x400, scoped, tag = 'input window, operand 8, single buffered']
    #allocation15 [shape = 's32[1]{0}', space=sflag, size = 0x4, scoped, tag = 'scoped memory for encoder_forward.1']
    #allocation16 [shape = 'u8[512]{0}', space=smem, size = 0x200, scoped, tag = 'input window, operand 9, single buffered']
    %16 = vsyncpa [#allocation3], 0
    %17 = vsyncpa [#allocation6], 0
    %18 = vsyncpa [#allocation9], 0
    %19 = vsyncpa [#allocation12], 0
    %20 = vsyncpa [#allocation15], 0
    %21 = vsyncpa [#allocation4], 0
    // Predicated region
    $region2: #{encoder_forward.1} parent=1 // pred_check
      _
    $region3: #{encoder_forward.1} parent=1 // pred_check_branch
      %23 = sbr.rel (0) target = $region5
    $region4: #{encoder_forward.1} parent=1 // pred_region
      _
    $region5: #{encoder_forward.1} parent=1 // pred_fallthru
      _
    // Predicated region
    $region6: #{encoder_forward.1} parent=1 // pred_check
      _
    $region7: #{encoder_forward.1} parent=1 // pred_check_branch
      %25 = sbr.rel (0) target = $region9
    $region8: #{encoder_forward.1} parent=1 // pred_region
      %s27 = ssub.s32 49152, 49152
      %28 = vsyncadd [#allocation3], %s27
      %s29 = sshll.u32 [#allocation2], 4
      %s30 = int_to_ptr.vmem [resolvable:$true] %s29
      %35 = dma.hbm_to_vmem [thread:$0]  %s1, 49152, %s30, [#allocation3], 512, 512, 32
    $region9: #{encoder_forward.1} parent=1 // pred_fallthru
      _
    // Predicated region
    $region10: #{encoder_forward.1} parent=1 // pred_check
      _
    $region11: #{encoder_forward.1} parent=1 // pred_check_branch
      %37 = sbr.rel (0) target = $region13
    $region12: #{encoder_forward.1} parent=1 // pred_region
      %s39 = ssub.s32 64, 64
      %40 = vsyncadd [#allocation6], %s39
      %s42 = sshll.u32 [#allocation5], 4
      %s43 = int_to_ptr.vmem [resolvable:$true] %s42
      %45 = dma.hbm_to_vmem [thread:$0]  %s2, 64, %s43, [#allocation6]
    $region13: #{encoder_forward.1} parent=1 // pred_fallthru
      _
    // Predicated region
    $region14: #{encoder_forward.1} parent=1 // pred_check
      _
    $region15: #{encoder_forward.1} parent=1 // pred_check_branch
      %47 = sbr.rel (0) target = $region17
    $region16: #{encoder_forward.1} parent=1 // pred_region
      %s49 = ssub.s32 8192, 8192
      %50 = vsyncadd [#allocation6], %s49
      %s51 = sshll.u32 [#allocation7], 4
      %s52 = int_to_ptr.vmem [resolvable:$true] %s51
      %57 = dma.hbm_to_vmem [thread:$0]  %s3, 8192, %s52, [#allocation6], 128, 128, 8
    $region17: #{encoder_forward.1} parent=1 // pred_fallthru
      _
    // Predicated region
    $region18: #{encoder_forward.1} parent=1 // pred_check
      _
    $region19: #{encoder_forward.1} parent=1 // pred_check_branch
      %59 = sbr.rel (0) target = $region21
    $region20: #{encoder_forward.1} parent=1 // pred_region
      %s61 = ssub.s32 16, 16
      %62 = vsyncadd [#allocation9], %s61
      %s64 = sshll.u32 [#allocation8], 4
      %s65 = int_to_ptr.vmem [resolvable:$true] %s64
      %67 = dma.hbm_to_vmem [thread:$0]  %s4, 16, %s65, [#allocation9]
    $region21: #{encoder_forward.1} parent=1 // pred_fallthru
      _
    // Predicated region
    $region22: #{encoder_forward.1} parent=1 // pred_check
      _
    $region23: #{encoder_forward.1} parent=1 // pred_check_branch
      %69 = sbr.rel (0) target = $region25
    $region24: #{encoder_forward.1} parent=1 // pred_region
      %s71 = ssub.s32 2048, 2048
      %72 = vsyncadd [#allocation9], %s71
      %s73 = sshll.u32 [#allocation10], 4
      %s74 = int_to_ptr.vmem [resolvable:$true] %s73
      %79 = dma.hbm_to_vmem [thread:$0]  %s5, 2048, %s74, [#allocation9], 128, 128, 8
    $region25: #{encoder_forward.1} parent=1 // pred_fallthru
      _
    // Predicated region
    $region26: #{encoder_forward.1} parent=1 // pred_check
      _
    $region27: #{encoder_forward.1} parent=1 // pred_check_branch
      %81 = sbr.rel (0) target = $region29
    $region28: #{encoder_forward.1} parent=1 // pred_region
      %s83 = ssub.s32 16, 16
      %84 = vsyncadd [#allocation12], %s83
      %s86 = sshll.u32 [#allocation11], 4
      %s87 = int_to_ptr.vmem [resolvable:$true] %s86
      %89 = dma.hbm_to_vmem [thread:$0]  %s6, 16, %s87, [#allocation12]
    $region29: #{encoder_forward.1} parent=1 // pred_fallthru
      _
    // Predicated region
    $region30: #{encoder_forward.1} parent=1 // pred_check
      _
    $region31: #{encoder_forward.1} parent=1 // pred_check_branch
      %91 = sbr.rel (0) target = $region33
    $region32: #{encoder_forward.1} parent=1 // pred_region
      %s93 = ssub.s32 4096, 4096
      %94 = vsyncadd [#allocation12], %s93
      %s95 = sshll.u32 [#allocation13], 4
      %s96 = int_to_ptr.vmem [resolvable:$true] %s95
      %101 = dma.hbm_to_vmem [thread:$0]  %s7, 4096, %s96, [#allocation12], 256, 256, 16
    $region33: #{encoder_forward.1} parent=1 // pred_fallthru
      _
    // Predicated region
    $region34: #{encoder_forward.1} parent=1 // pred_check
      _
    $region35: #{encoder_forward.1} parent=1 // pred_check_branch
      %103 = sbr.rel (0) target = $region37
    $region36: #{encoder_forward.1} parent=1 // pred_region
      %s105 = ssub.s32 32, 32
      %106 = vsyncadd [#allocation15], %s105
      %s108 = sshll.u32 [#allocation14], 4
      %s109 = int_to_ptr.vmem [resolvable:$true] %s108
      %111 = dma.hbm_to_vmem [thread:$0]  %s8, 32, %s109, [#allocation15]
    $region37: #{encoder_forward.1} parent=1 // pred_fallthru
      _
    // Predicated region
    $region38: #{encoder_forward.1} parent=1 // pred_check
      _
    $region39: #{encoder_forward.1} parent=1 // pred_check_branch
      %113 = sbr.rel (0) target = $region41
    $region40: #{encoder_forward.1} parent=1 // pred_region
      %s115 = ssub.s32 16, 16
      %116 = vsyncadd [#allocation4], %s115
      %s118 = sshll.u32 %s9, 4
      %s119 = int_to_ptr.vmem [resolvable:$true] %s118
      %121 = dma.vmem_to_smem %s119, 16, [#allocation16], [#allocation4]
    $region41: #{encoder_forward.1} parent=1 // pred_fallthru
      _
    // Predicated region
    $region42: #{encoder_forward.1} parent=1 // pred_check
      _
    $region43: #{encoder_forward.1} parent=1 // pred_check_branch
      %123 = sbr.rel (0) target = $region45
    $region44: #{encoder_forward.1} parent=1 // pred_region
      _
    $region45: #{encoder_forward.1} parent=1 // pred_fallthru
      _
    // Predicated region
    $region46: #{encoder_forward.1} parent=1 // pred_check
      _
    $region47: #{encoder_forward.1} parent=1 // pred_check_branch
      %125 = sbr.rel (0) target = $region49
    $region48: #{encoder_forward.1} parent=1 // pred_region
      %126 = dma.done [#allocation3], 49152
    $region49: #{encoder_forward.1} parent=1 // pred_fallthru
      _
    // Predicated region
    $region50: #{encoder_forward.1} parent=1 // pred_check
      _
    $region51: #{encoder_forward.1} parent=1 // pred_check_branch
      %128 = sbr.rel (0) target = $region53
    $region52: #{encoder_forward.1} parent=1 // pred_region
      %129 = dma.done [#allocation6], 64
    $region53: #{encoder_forward.1} parent=1 // pred_fallthru
      _
    // Predicated region
    $region54: #{encoder_forward.1} parent=1 // pred_check
      _
    $region55: #{encoder_forward.1} parent=1 // pred_check_branch
      %131 = sbr.rel (0) target = $region57
    $region56: #{encoder_forward.1} parent=1 // pred_region
      %132 = dma.done [#allocation6], 8192
    $region57: #{encoder_forward.1} parent=1 // pred_fallthru
      _
    // Predicated region
    $region58: #{encoder_forward.1} parent=1 // pred_check
      _
    $region59: #{encoder_forward.1} parent=1 // pred_check_branch
      %134 = sbr.rel (0) target = $region61
    $region60: #{encoder_forward.1} parent=1 // pred_region
      %135 = dma.done [#allocation9], 16
    $region61: #{encoder_forward.1} parent=1 // pred_fallthru
      _
    // Predicated region
    $region62: #{encoder_forward.1} parent=1 // pred_check
      _
    $region63: #{encoder_forward.1} parent=1 // pred_check_branch
      %137 = sbr.rel (0) target = $region65
    $region64: #{encoder_forward.1} parent=1 // pred_region
      %138 = dma.done [#allocation9], 2048
    $region65: #{encoder_forward.1} parent=1 // pred_fallthru
      _
    // Predicated region
    $region66: #{encoder_forward.1} parent=1 // pred_check
      _
    $region67: #{encoder_forward.1} parent=1 // pred_check_branch
      %140 = sbr.rel (0) target = $region69
    $region68: #{encoder_forward.1} parent=1 // pred_region
      %141 = dma.done [#allocation12], 16
    $region69: #{encoder_forward.1} parent=1 // pred_fallthru
      _
    // Predicated region
    $region70: #{encoder_forward.1} parent=1 // pred_check
      _
    $region71: #{encoder_forward.1} parent=1 // pred_check_branch
      %143 = sbr.rel (0) target = $region73
    $region72: #{encoder_forward.1} parent=1 // pred_region
      %144 = dma.done [#allocation12], 4096
    $region73: #{encoder_forward.1} parent=1 // pred_fallthru
      _
    // Predicated region
    $region74: #{encoder_forward.1} parent=1 // pred_check
      _
    $region75: #{encoder_forward.1} parent=1 // pred_check_branch
      %146 = sbr.rel (0) target = $region77
    $region76: #{encoder_forward.1} parent=1 // pred_region
      %147 = dma.done [#allocation15], 32
    $region77: #{encoder_forward.1} parent=1 // pred_fallthru
      _
    // Predicated region
    $region78: #{encoder_forward.1} parent=1 // pred_check
      _
    $region79: #{encoder_forward.1} parent=1 // pred_check_branch
      %149 = sbr.rel (0) target = $region81
    $region80: #{encoder_forward.1} parent=1 // pred_region
      %150 = dma.done [#allocation4], 16
    $region81: #{encoder_forward.1} parent=1 // pred_fallthru
      _
    %151 = sfence
    %v152 = vld [vmem:[%s0] sm:$0xff]
    %v153 = vld [vmem:[%s0 + $0x8] sm:$0xff]
    %v154 = vld [vmem:[%s0 + $0x10] sm:$0xff]
    %v155 = vld [vmem:[%s0 + $0x18] sm:$0xff]
    %v156 = vld [vmem:[%s0 + $0x20] sm:$0xff]
    %v157 = vld [vmem:[%s0 + $0x28] sm:$0xff]
    %v158 = vld [vmem:[#allocation2] sm:$0xff]
    %v159 = vld [vmem:[#allocation2 + $0x8] sm:$0xff]
    %v160 = vld [vmem:[#allocation2 + $0x10] sm:$0xff]
    %v161 = vld [vmem:[#allocation2 + $0x18] sm:$0xff]
    %v162 = vld [vmem:[#allocation2 + $0x20] sm:$0xff]
    %v163 = vld [vmem:[#allocation2 + $0x28] sm:$0xff]
    %v164 = vld [vmem:[#allocation2 + $0x30] sm:$0xff]
    %v165 = vld [vmem:[#allocation2 + $0x38] sm:$0xff]
    %v166 = vld [vmem:[#allocation2 + $0x40] sm:$0xff]
    %v167 = vld [vmem:[#allocation2 + $0x48] sm:$0xff]
    %v168 = vld [vmem:[#allocation2 + $0x50] sm:$0xff]
    %v169 = vld [vmem:[#allocation2 + $0x58] sm:$0xff]
    %v170 = vld [vmem:[#allocation2 + $0x60] sm:$0xff]
    %v171 = vld [vmem:[#allocation2 + $0x68] sm:$0xff]
    %v172 = vld [vmem:[#allocation2 + $0x70] sm:$0xff]
    %v173 = vld [vmem:[#allocation2 + $0x78] sm:$0xff]
    %v174 = vld [vmem:[#allocation2 + $0x80] sm:$0xff]
    %v175 = vld [vmem:[#allocation2 + $0x88] sm:$0xff]
    %v176 = vld [vmem:[#allocation2 + $0x90] sm:$0xff]
    %v177 = vld [vmem:[#allocation2 + $0x98] sm:$0xff]
    %v178 = vld [vmem:[#allocation2 + $0xa0] sm:$0xff]
    %v179 = vld [vmem:[#allocation2 + $0xa8] sm:$0xff]
    %v180 = vld [vmem:[#allocation2 + $0xb0] sm:$0xff]
    %v181 = vld [vmem:[#allocation2 + $0xb8] sm:$0xff]
    %v182 = vld [vmem:[#allocation2 + $0xc0] sm:$0xff]
    %v183 = vld [vmem:[#allocation2 + $0xc8] sm:$0xff]
    %v184 = vld [vmem:[#allocation2 + $0xd0] sm:$0xff]
    %v185 = vld [vmem:[#allocation2 + $0xd8] sm:$0xff]
    %v186 = vld [vmem:[#allocation2 + $0xe0] sm:$0xff]
    %v187 = vld [vmem:[#allocation2 + $0xe8] sm:$0xff]
    %v188 = vld [vmem:[#allocation2 + $0xf0] sm:$0xff]
    %v189 = vld [vmem:[#allocation2 + $0xf8] sm:$0xff]
    %v190 = vld [vmem:[#allocation2 + $0x100] sm:$0xff]
    %v191 = vld [vmem:[#allocation2 + $0x108] sm:$0xff]
    %v192 = vld [vmem:[#allocation2 + $0x110] sm:$0xff]
    %v193 = vld [vmem:[#allocation2 + $0x118] sm:$0xff]
    %v194 = vld [vmem:[#allocation2 + $0x120] sm:$0xff]
    %v195 = vld [vmem:[#allocation2 + $0x128] sm:$0xff]
    %v196 = vld [vmem:[#allocation2 + $0x130] sm:$0xff]
    %v197 = vld [vmem:[#allocation2 + $0x138] sm:$0xff]
    %v198 = vld [vmem:[#allocation2 + $0x140] sm:$0xff]
    %v199 = vld [vmem:[#allocation2 + $0x148] sm:$0xff]
    %v200 = vld [vmem:[#allocation2 + $0x150] sm:$0xff]
    %v201 = vld [vmem:[#allocation2 + $0x158] sm:$0xff]
    %v202 = vld [vmem:[#allocation2 + $0x160] sm:$0xff]
    %v203 = vld [vmem:[#allocation2 + $0x168] sm:$0xff]
    %v204 = vld [vmem:[#allocation2 + $0x170] sm:$0xff]
    %v205 = vld [vmem:[#allocation2 + $0x178] sm:$0xff]
    %v206 = vld [vmem:[#allocation2 + $0x180] sm:$0xff]
    %v207 = vld [vmem:[#allocation2 + $0x188] sm:$0xff]
    %v208 = vld [vmem:[#allocation2 + $0x190] sm:$0xff]
    %v209 = vld [vmem:[#allocation2 + $0x198] sm:$0xff]
    %v210 = vld [vmem:[#allocation2 + $0x1a0] sm:$0xff]
    %v211 = vld [vmem:[#allocation2 + $0x1a8] sm:$0xff]
    %v212 = vld [vmem:[#allocation2 + $0x1b0] sm:$0xff]
    %v213 = vld [vmem:[#allocation2 + $0x1b8] sm:$0xff]
    %v214 = vld [vmem:[#allocation2 + $0x1c0] sm:$0xff]
    %v215 = vld [vmem:[#allocation2 + $0x1c8] sm:$0xff]
    %v216 = vld [vmem:[#allocation2 + $0x1d0] sm:$0xff]
    %v217 = vld [vmem:[#allocation2 + $0x1d8] sm:$0xff]
    %v218 = vld [vmem:[#allocation2 + $0x1e0] sm:$0xff]
    %v219 = vld [vmem:[#allocation2 + $0x1e8] sm:$0xff]
    %v220 = vld [vmem:[#allocation2 + $0x1f0] sm:$0xff]
    %v221 = vld [vmem:[#allocation2 + $0x1f8] sm:$0xff]
    %v222 = vld [vmem:[#allocation2 + $0x200] sm:$0xff]
    %v223 = vld [vmem:[#allocation2 + $0x208] sm:$0xff]
    %v224 = vld [vmem:[#allocation2 + $0x210] sm:$0xff]
    %v225 = vld [vmem:[#allocation2 + $0x218] sm:$0xff]
    %v226 = vld [vmem:[#allocation2 + $0x220] sm:$0xff]
    %v227 = vld [vmem:[#allocation2 + $0x228] sm:$0xff]
    %v228 = vld [vmem:[#allocation2 + $0x230] sm:$0xff]
    %v229 = vld [vmem:[#allocation2 + $0x238] sm:$0xff]
    %v230 = vld [vmem:[#allocation2 + $0x240] sm:$0xff]
    %v231 = vld [vmem:[#allocation2 + $0x248] sm:$0xff]
    %v232 = vld [vmem:[#allocation2 + $0x250] sm:$0xff]
    %v233 = vld [vmem:[#allocation2 + $0x258] sm:$0xff]
    %v234 = vld [vmem:[#allocation2 + $0x260] sm:$0xff]
    %v235 = vld [vmem:[#allocation2 + $0x268] sm:$0xff]
    %v236 = vld [vmem:[#allocation2 + $0x270] sm:$0xff]
    %v237 = vld [vmem:[#allocation2 + $0x278] sm:$0xff]
    %v238 = vld [vmem:[#allocation2 + $0x280] sm:$0xff]
    %v239 = vld [vmem:[#allocation2 + $0x288] sm:$0xff]
    %v240 = vld [vmem:[#allocation2 + $0x290] sm:$0xff]
    %v241 = vld [vmem:[#allocation2 + $0x298] sm:$0xff]
    %v242 = vld [vmem:[#allocation2 + $0x2a0] sm:$0xff]
    %v243 = vld [vmem:[#allocation2 + $0x2a8] sm:$0xff]
    %v244 = vld [vmem:[#allocation2 + $0x2b0] sm:$0xff]
    %v245 = vld [vmem:[#allocation2 + $0x2b8] sm:$0xff]
    %v246 = vld [vmem:[#allocation2 + $0x2c0] sm:$0xff]
    %v247 = vld [vmem:[#allocation2 + $0x2c8] sm:$0xff]
    %v248 = vld [vmem:[#allocation2 + $0x2d0] sm:$0xff]
    %v249 = vld [vmem:[#allocation2 + $0x2d8] sm:$0xff]
    %v250 = vld [vmem:[#allocation2 + $0x2e0] sm:$0xff]
    %v251 = vld [vmem:[#allocation2 + $0x2e8] sm:$0xff]
    %v252 = vld [vmem:[#allocation2 + $0x2f0] sm:$0xff]
    %v253 = vld [vmem:[#allocation2 + $0x2f8] sm:$0xff]
    %v254 = vld [vmem:[#allocation2 + $0x300] sm:$0xff]
    %v255 = vld [vmem:[#allocation2 + $0x308] sm:$0xff]
    %v256 = vld [vmem:[#allocation2 + $0x310] sm:$0xff]
    %v257 = vld [vmem:[#allocation2 + $0x318] sm:$0xff]
    %v258 = vld [vmem:[#allocation2 + $0x320] sm:$0xff]
    %v259 = vld [vmem:[#allocation2 + $0x328] sm:$0xff]
    %v260 = vld [vmem:[#allocation2 + $0x330] sm:$0xff]
    %v261 = vld [vmem:[#allocation2 + $0x338] sm:$0xff]
    %v262 = vld [vmem:[#allocation2 + $0x340] sm:$0xff]
    %v263 = vld [vmem:[#allocation2 + $0x348] sm:$0xff]
    %v264 = vld [vmem:[#allocation2 + $0x350] sm:$0xff]
    %v265 = vld [vmem:[#allocation2 + $0x358] sm:$0xff]
    %v266 = vld [vmem:[#allocation2 + $0x360] sm:$0xff]
    %v267 = vld [vmem:[#allocation2 + $0x368] sm:$0xff]
    %v268 = vld [vmem:[#allocation2 + $0x370] sm:$0xff]
    %v269 = vld [vmem:[#allocation2 + $0x378] sm:$0xff]
    %v270 = vld [vmem:[#allocation2 + $0x380] sm:$0xff]
    %v271 = vld [vmem:[#allocation2 + $0x388] sm:$0xff]
    %v272 = vld [vmem:[#allocation2 + $0x390] sm:$0xff]
    %v273 = vld [vmem:[#allocation2 + $0x398] sm:$0xff]
    %v274 = vld [vmem:[#allocation2 + $0x3a0] sm:$0xff]
    %v275 = vld [vmem:[#allocation2 + $0x3a8] sm:$0xff]
    %v276 = vld [vmem:[#allocation2 + $0x3b0] sm:$0xff]
    %v277 = vld [vmem:[#allocation2 + $0x3b8] sm:$0xff]
    %v278 = vld [vmem:[#allocation2 + $0x3c0] sm:$0xff]
    %v279 = vld [vmem:[#allocation2 + $0x3c8] sm:$0xff]
    %v280 = vld [vmem:[#allocation2 + $0x3d0] sm:$0xff]
    %v281 = vld [vmem:[#allocation2 + $0x3d8] sm:$0xff]
    %v282 = vld [vmem:[#allocation2 + $0x3e0] sm:$0xff]
    %v283 = vld [vmem:[#allocation2 + $0x3e8] sm:$0xff]
    %v284 = vld [vmem:[#allocation2 + $0x3f0] sm:$0xff]
    %v285 = vld [vmem:[#allocation2 + $0x3f8] sm:$0xff]
    %v286 = vld [vmem:[#allocation2 + $0x400] sm:$0xff]
    %v287 = vld [vmem:[#allocation2 + $0x408] sm:$0xff]
    %v288 = vld [vmem:[#allocation2 + $0x410] sm:$0xff]
    %v289 = vld [vmem:[#allocation2 + $0x418] sm:$0xff]
    %v290 = vld [vmem:[#allocation2 + $0x420] sm:$0xff]
    %v291 = vld [vmem:[#allocation2 + $0x428] sm:$0xff]
    %v292 = vld [vmem:[#allocation2 + $0x430] sm:$0xff]
    %v293 = vld [vmem:[#allocation2 + $0x438] sm:$0xff]
    %v294 = vld [vmem:[#allocation2 + $0x440] sm:$0xff]
    %v295 = vld [vmem:[#allocation2 + $0x448] sm:$0xff]
    %v296 = vld [vmem:[#allocation2 + $0x450] sm:$0xff]
    %v297 = vld [vmem:[#allocation2 + $0x458] sm:$0xff]
    %v298 = vld [vmem:[#allocation2 + $0x460] sm:$0xff]
    %v299 = vld [vmem:[#allocation2 + $0x468] sm:$0xff]
    %v300 = vld [vmem:[#allocation2 + $0x470] sm:$0xff]
    %v301 = vld [vmem:[#allocation2 + $0x478] sm:$0xff]
    %v302 = vld [vmem:[#allocation2 + $0x480] sm:$0xff]
    %v303 = vld [vmem:[#allocation2 + $0x488] sm:$0xff]
    %v304 = vld [vmem:[#allocation2 + $0x490] sm:$0xff]
    %v305 = vld [vmem:[#allocation2 + $0x498] sm:$0xff]
    %v306 = vld [vmem:[#allocation2 + $0x4a0] sm:$0xff]
    %v307 = vld [vmem:[#allocation2 + $0x4a8] sm:$0xff]
    %v308 = vld [vmem:[#allocation2 + $0x4b0] sm:$0xff]
    %v309 = vld [vmem:[#allocation2 + $0x4b8] sm:$0xff]
    %v310 = vld [vmem:[#allocation2 + $0x4c0] sm:$0xff]
    %v311 = vld [vmem:[#allocation2 + $0x4c8] sm:$0xff]
    %v312 = vld [vmem:[#allocation2 + $0x4d0] sm:$0xff]
    %v313 = vld [vmem:[#allocation2 + $0x4d8] sm:$0xff]
    %v314 = vld [vmem:[#allocation2 + $0x4e0] sm:$0xff]
    %v315 = vld [vmem:[#allocation2 + $0x4e8] sm:$0xff]
    %v316 = vld [vmem:[#allocation2 + $0x4f0] sm:$0xff]
    %v317 = vld [vmem:[#allocation2 + $0x4f8] sm:$0xff]
    %v318 = vld [vmem:[#allocation2 + $0x500] sm:$0xff]
    %v319 = vld [vmem:[#allocation2 + $0x508] sm:$0xff]
    %v320 = vld [vmem:[#allocation2 + $0x510] sm:$0xff]
    %v321 = vld [vmem:[#allocation2 + $0x518] sm:$0xff]
    %v322 = vld [vmem:[#allocation2 + $0x520] sm:$0xff]
    %v323 = vld [vmem:[#allocation2 + $0x528] sm:$0xff]
    %v324 = vld [vmem:[#allocation2 + $0x530] sm:$0xff]
    %v325 = vld [vmem:[#allocation2 + $0x538] sm:$0xff]
    %v326 = vld [vmem:[#allocation2 + $0x540] sm:$0xff]
    %v327 = vld [vmem:[#allocation2 + $0x548] sm:$0xff]
    %v328 = vld [vmem:[#allocation2 + $0x550] sm:$0xff]
    %v329 = vld [vmem:[#allocation2 + $0x558] sm:$0xff]
    %v330 = vld [vmem:[#allocation2 + $0x560] sm:$0xff]
    %v331 = vld [vmem:[#allocation2 + $0x568] sm:$0xff]
    %v332 = vld [vmem:[#allocation2 + $0x570] sm:$0xff]
    %v333 = vld [vmem:[#allocation2 + $0x578] sm:$0xff]
    %v334 = vld [vmem:[#allocation2 + $0x580] sm:$0xff]
    %v335 = vld [vmem:[#allocation2 + $0x588] sm:$0xff]
    %v336 = vld [vmem:[#allocation2 + $0x590] sm:$0xff]
    %v337 = vld [vmem:[#allocation2 + $0x598] sm:$0xff]
    %v338 = vld [vmem:[#allocation2 + $0x5a0] sm:$0xff]
    %v339 = vld [vmem:[#allocation2 + $0x5a8] sm:$0xff]
    %v340 = vld [vmem:[#allocation2 + $0x5b0] sm:$0xff]
    %v341 = vld [vmem:[#allocation2 + $0x5b8] sm:$0xff]
    %v342 = vld [vmem:[#allocation2 + $0x5c0] sm:$0xff]
    %v343 = vld [vmem:[#allocation2 + $0x5c8] sm:$0xff]
    %v344 = vld [vmem:[#allocation2 + $0x5d0] sm:$0xff]
    %v345 = vld [vmem:[#allocation2 + $0x5d8] sm:$0xff]
    %v346 = vld [vmem:[#allocation2 + $0x5e0] sm:$0xff]
    %v347 = vld [vmem:[#allocation2 + $0x5e8] sm:$0xff]
    %v348 = vld [vmem:[#allocation2 + $0x5f0] sm:$0xff]
    %v349 = vld [vmem:[#allocation2 + $0x5f8] sm:$0xff]
    %v350 = vld [vmem:[#allocation2 + $0x600] sm:$0xff]
    %v351 = vld [vmem:[#allocation2 + $0x608] sm:$0xff]
    %v352 = vld [vmem:[#allocation2 + $0x610] sm:$0xff]
    %v353 = vld [vmem:[#allocation2 + $0x618] sm:$0xff]
    %v354 = vld [vmem:[#allocation2 + $0x620] sm:$0xff]
    %v355 = vld [vmem:[#allocation2 + $0x628] sm:$0xff]
    %v356 = vld [vmem:[#allocation2 + $0x630] sm:$0xff]
    %v357 = vld [vmem:[#allocation2 + $0x638] sm:$0xff]
    %v358 = vld [vmem:[#allocation2 + $0x640] sm:$0xff]
    %v359 = vld [vmem:[#allocation2 + $0x648] sm:$0xff]
    %v360 = vld [vmem:[#allocation2 + $0x650] sm:$0xff]
    %v361 = vld [vmem:[#allocation2 + $0x658] sm:$0xff]
    %v362 = vld [vmem:[#allocation2 + $0x660] sm:$0xff]
    %v363 = vld [vmem:[#allocation2 + $0x668] sm:$0xff]
    %v364 = vld [vmem:[#allocation2 + $0x670] sm:$0xff]
    %v365 = vld [vmem:[#allocation2 + $0x678] sm:$0xff]
    %v366 = vld [vmem:[#allocation2 + $0x680] sm:$0xff]
    %v367 = vld [vmem:[#allocation2 + $0x688] sm:$0xff]
    %v368 = vld [vmem:[#allocation2 + $0x690] sm:$0xff]
    %v369 = vld [vmem:[#allocation2 + $0x698] sm:$0xff]
    %v370 = vld [vmem:[#allocation2 + $0x6a0] sm:$0xff]
    %v371 = vld [vmem:[#allocation2 + $0x6a8] sm:$0xff]
    %v372 = vld [vmem:[#allocation2 + $0x6b0] sm:$0xff]
    %v373 = vld [vmem:[#allocation2 + $0x6b8] sm:$0xff]
    %v374 = vld [vmem:[#allocation2 + $0x6c0] sm:$0xff]
    %v375 = vld [vmem:[#allocation2 + $0x6c8] sm:$0xff]
    %v376 = vld [vmem:[#allocation2 + $0x6d0] sm:$0xff]
    %v377 = vld [vmem:[#allocation2 + $0x6d8] sm:$0xff]
    %v378 = vld [vmem:[#allocation2 + $0x6e0] sm:$0xff]
    %v379 = vld [vmem:[#allocation2 + $0x6e8] sm:$0xff]
    %v380 = vld [vmem:[#allocation2 + $0x6f0] sm:$0xff]
    %v381 = vld [vmem:[#allocation2 + $0x6f8] sm:$0xff]
    %v382 = vld [vmem:[#allocation2 + $0x700] sm:$0xff]
    %v383 = vld [vmem:[#allocation2 + $0x708] sm:$0xff]
    %v384 = vld [vmem:[#allocation2 + $0x710] sm:$0xff]
    %v385 = vld [vmem:[#allocation2 + $0x718] sm:$0xff]
    %v386 = vld [vmem:[#allocation2 + $0x720] sm:$0xff]
    %v387 = vld [vmem:[#allocation2 + $0x728] sm:$0xff]
    %v388 = vld [vmem:[#allocation2 + $0x730] sm:$0xff]
    %v389 = vld [vmem:[#allocation2 + $0x738] sm:$0xff]
    %v390 = vld [vmem:[#allocation2 + $0x740] sm:$0xff]
    %v391 = vld [vmem:[#allocation2 + $0x748] sm:$0xff]
    %v392 = vld [vmem:[#allocation2 + $0x750] sm:$0xff]
    %v393 = vld [vmem:[#allocation2 + $0x758] sm:$0xff]
    %v394 = vld [vmem:[#allocation2 + $0x760] sm:$0xff]
    %v395 = vld [vmem:[#allocation2 + $0x768] sm:$0xff]
    %v396 = vld [vmem:[#allocation2 + $0x770] sm:$0xff]
    %v397 = vld [vmem:[#allocation2 + $0x778] sm:$0xff]
    %v398 = vld [vmem:[#allocation2 + $0x780] sm:$0xff]
    %v399 = vld [vmem:[#allocation2 + $0x788] sm:$0xff]
    %v400 = vld [vmem:[#allocation2 + $0x790] sm:$0xff]
    %v401 = vld [vmem:[#allocation2 + $0x798] sm:$0xff]
    %v402 = vld [vmem:[#allocation2 + $0x7a0] sm:$0xff]
    %v403 = vld [vmem:[#allocation2 + $0x7a8] sm:$0xff]
    %v404 = vld [vmem:[#allocation2 + $0x7b0] sm:$0xff]
    %v405 = vld [vmem:[#allocation2 + $0x7b8] sm:$0xff]
    %v406 = vld [vmem:[#allocation2 + $0x7c0] sm:$0xff]
    %v407 = vld [vmem:[#allocation2 + $0x7c8] sm:$0xff]
    %v408 = vld [vmem:[#allocation2 + $0x7d0] sm:$0xff]
    %v409 = vld [vmem:[#allocation2 + $0x7d8] sm:$0xff]
    %v410 = vld [vmem:[#allocation2 + $0x7e0] sm:$0xff]
    %v411 = vld [vmem:[#allocation2 + $0x7e8] sm:$0xff]
    %v412 = vld [vmem:[#allocation2 + $0x7f0] sm:$0xff]
    %v413 = vld [vmem:[#allocation2 + $0x7f8] sm:$0xff]
    %v414 = vld [vmem:[#allocation2 + $0x800] sm:$0xff]
    %v415 = vld [vmem:[#allocation2 + $0x808] sm:$0xff]
    %v416 = vld [vmem:[#allocation2 + $0x810] sm:$0xff]
    %v417 = vld [vmem:[#allocation2 + $0x818] sm:$0xff]
    %v418 = vld [vmem:[#allocation2 + $0x820] sm:$0xff]
    %v419 = vld [vmem:[#allocation2 + $0x828] sm:$0xff]
    %v420 = vld [vmem:[#allocation2 + $0x830] sm:$0xff]
    %v421 = vld [vmem:[#allocation2 + $0x838] sm:$0xff]
    %v422 = vld [vmem:[#allocation2 + $0x840] sm:$0xff]
    %v423 = vld [vmem:[#allocation2 + $0x848] sm:$0xff]
    %v424 = vld [vmem:[#allocation2 + $0x850] sm:$0xff]
    %v425 = vld [vmem:[#allocation2 + $0x858] sm:$0xff]
    %v426 = vld [vmem:[#allocation2 + $0x860] sm:$0xff]
    %v427 = vld [vmem:[#allocation2 + $0x868] sm:$0xff]
    %v428 = vld [vmem:[#allocation2 + $0x870] sm:$0xff]
    %v429 = vld [vmem:[#allocation2 + $0x878] sm:$0xff]
    %v430 = vld [vmem:[#allocation2 + $0x880] sm:$0xff]
    %v431 = vld [vmem:[#allocation2 + $0x888] sm:$0xff]
    %v432 = vld [vmem:[#allocation2 + $0x890] sm:$0xff]
    %v433 = vld [vmem:[#allocation2 + $0x898] sm:$0xff]
    %v434 = vld [vmem:[#allocation2 + $0x8a0] sm:$0xff]
    %v435 = vld [vmem:[#allocation2 + $0x8a8] sm:$0xff]
    %v436 = vld [vmem:[#allocation2 + $0x8b0] sm:$0xff]
    %v437 = vld [vmem:[#allocation2 + $0x8b8] sm:$0xff]
    %v438 = vld [vmem:[#allocation2 + $0x8c0] sm:$0xff]
    %v439 = vld [vmem:[#allocation2 + $0x8c8] sm:$0xff]
    %v440 = vld [vmem:[#allocation2 + $0x8d0] sm:$0xff]
    %v441 = vld [vmem:[#allocation2 + $0x8d8] sm:$0xff]
    %v442 = vld [vmem:[#allocation2 + $0x8e0] sm:$0xff]
    %v443 = vld [vmem:[#allocation2 + $0x8e8] sm:$0xff]
    %v444 = vld [vmem:[#allocation2 + $0x8f0] sm:$0xff]
    %v445 = vld [vmem:[#allocation2 + $0x8f8] sm:$0xff]
    %v446 = vld [vmem:[#allocation2 + $0x900] sm:$0xff]
    %v447 = vld [vmem:[#allocation2 + $0x908] sm:$0xff]
    %v448 = vld [vmem:[#allocation2 + $0x910] sm:$0xff]
    %v449 = vld [vmem:[#allocation2 + $0x918] sm:$0xff]
    %v450 = vld [vmem:[#allocation2 + $0x920] sm:$0xff]
    %v451 = vld [vmem:[#allocation2 + $0x928] sm:$0xff]
    %v452 = vld [vmem:[#allocation2 + $0x930] sm:$0xff]
    %v453 = vld [vmem:[#allocation2 + $0x938] sm:$0xff]
    %v454 = vld [vmem:[#allocation2 + $0x940] sm:$0xff]
    %v455 = vld [vmem:[#allocation2 + $0x948] sm:$0xff]
    %v456 = vld [vmem:[#allocation2 + $0x950] sm:$0xff]
    %v457 = vld [vmem:[#allocation2 + $0x958] sm:$0xff]
    %v458 = vld [vmem:[#allocation2 + $0x960] sm:$0xff]
    %v459 = vld [vmem:[#allocation2 + $0x968] sm:$0xff]
    %v460 = vld [vmem:[#allocation2 + $0x970] sm:$0xff]
    %v461 = vld [vmem:[#allocation2 + $0x978] sm:$0xff]
    %v462 = vld [vmem:[#allocation2 + $0x980] sm:$0xff]
    %v463 = vld [vmem:[#allocation2 + $0x988] sm:$0xff]
    %v464 = vld [vmem:[#allocation2 + $0x990] sm:$0xff]
    %v465 = vld [vmem:[#allocation2 + $0x998] sm:$0xff]
    %v466 = vld [vmem:[#allocation2 + $0x9a0] sm:$0xff]
    %v467 = vld [vmem:[#allocation2 + $0x9a8] sm:$0xff]
    %v468 = vld [vmem:[#allocation2 + $0x9b0] sm:$0xff]
    %v469 = vld [vmem:[#allocation2 + $0x9b8] sm:$0xff]
    %v470 = vld [vmem:[#allocation2 + $0x9c0] sm:$0xff]
    %v471 = vld [vmem:[#allocation2 + $0x9c8] sm:$0xff]
    %v472 = vld [vmem:[#allocation2 + $0x9d0] sm:$0xff]
    %v473 = vld [vmem:[#allocation2 + $0x9d8] sm:$0xff]
    %v474 = vld [vmem:[#allocation2 + $0x9e0] sm:$0xff]
    %v475 = vld [vmem:[#allocation2 + $0x9e8] sm:$0xff]
    %v476 = vld [vmem:[#allocation2 + $0x9f0] sm:$0xff]
    %v477 = vld [vmem:[#allocation2 + $0x9f8] sm:$0xff]
    %v478 = vld [vmem:[#allocation2 + $0xa00] sm:$0xff]
    %v479 = vld [vmem:[#allocation2 + $0xa08] sm:$0xff]
    %v480 = vld [vmem:[#allocation2 + $0xa10] sm:$0xff]
    %v481 = vld [vmem:[#allocation2 + $0xa18] sm:$0xff]
    %v482 = vld [vmem:[#allocation2 + $0xa20] sm:$0xff]
    %v483 = vld [vmem:[#allocation2 + $0xa28] sm:$0xff]
    %v484 = vld [vmem:[#allocation2 + $0xa30] sm:$0xff]
    %v485 = vld [vmem:[#allocation2 + $0xa38] sm:$0xff]
    %v486 = vld [vmem:[#allocation2 + $0xa40] sm:$0xff]
    %v487 = vld [vmem:[#allocation2 + $0xa48] sm:$0xff]
    %v488 = vld [vmem:[#allocation2 + $0xa50] sm:$0xff]
    %v489 = vld [vmem:[#allocation2 + $0xa58] sm:$0xff]
    %v490 = vld [vmem:[#allocation2 + $0xa60] sm:$0xff]
    %v491 = vld [vmem:[#allocation2 + $0xa68] sm:$0xff]
    %v492 = vld [vmem:[#allocation2 + $0xa70] sm:$0xff]
    %v493 = vld [vmem:[#allocation2 + $0xa78] sm:$0xff]
    %v494 = vld [vmem:[#allocation2 + $0xa80] sm:$0xff]
    %v495 = vld [vmem:[#allocation2 + $0xa88] sm:$0xff]
    %v496 = vld [vmem:[#allocation2 + $0xa90] sm:$0xff]
    %v497 = vld [vmem:[#allocation2 + $0xa98] sm:$0xff]
    %v498 = vld [vmem:[#allocation2 + $0xaa0] sm:$0xff]
    %v499 = vld [vmem:[#allocation2 + $0xaa8] sm:$0xff]
    %v500 = vld [vmem:[#allocation2 + $0xab0] sm:$0xff]
    %v501 = vld [vmem:[#allocation2 + $0xab8] sm:$0xff]
    %v502 = vld [vmem:[#allocation2 + $0xac0] sm:$0xff]
    %v503 = vld [vmem:[#allocation2 + $0xac8] sm:$0xff]
    %v504 = vld [vmem:[#allocation2 + $0xad0] sm:$0xff]
    %v505 = vld [vmem:[#allocation2 + $0xad8] sm:$0xff]
    %v506 = vld [vmem:[#allocation2 + $0xae0] sm:$0xff]
    %v507 = vld [vmem:[#allocation2 + $0xae8] sm:$0xff]
    %v508 = vld [vmem:[#allocation2 + $0xaf0] sm:$0xff]
    %v509 = vld [vmem:[#allocation2 + $0xaf8] sm:$0xff]
    %v510 = vld [vmem:[#allocation2 + $0xb00] sm:$0xff]
    %v511 = vld [vmem:[#allocation2 + $0xb08] sm:$0xff]
    %v512 = vld [vmem:[#allocation2 + $0xb10] sm:$0xff]
    %v513 = vld [vmem:[#allocation2 + $0xb18] sm:$0xff]
    %v514 = vld [vmem:[#allocation2 + $0xb20] sm:$0xff]
    %v515 = vld [vmem:[#allocation2 + $0xb28] sm:$0xff]
    %v516 = vld [vmem:[#allocation2 + $0xb30] sm:$0xff]
    %v517 = vld [vmem:[#allocation2 + $0xb38] sm:$0xff]
    %v518 = vld [vmem:[#allocation2 + $0xb40] sm:$0xff]
    %v519 = vld [vmem:[#allocation2 + $0xb48] sm:$0xff]
    %v520 = vld [vmem:[#allocation2 + $0xb50] sm:$0xff]
    %v521 = vld [vmem:[#allocation2 + $0xb58] sm:$0xff]
    %v522 = vld [vmem:[#allocation2 + $0xb60] sm:$0xff]
    %v523 = vld [vmem:[#allocation2 + $0xb68] sm:$0xff]
    %v524 = vld [vmem:[#allocation2 + $0xb70] sm:$0xff]
    %v525 = vld [vmem:[#allocation2 + $0xb78] sm:$0xff]
    %v526 = vld [vmem:[#allocation2 + $0xb80] sm:$0xff]
    %v527 = vld [vmem:[#allocation2 + $0xb88] sm:$0xff]
    %v528 = vld [vmem:[#allocation2 + $0xb90] sm:$0xff]
    %v529 = vld [vmem:[#allocation2 + $0xb98] sm:$0xff]
    %v530 = vld [vmem:[#allocation2 + $0xba0] sm:$0xff]
    %v531 = vld [vmem:[#allocation2 + $0xba8] sm:$0xff]
    %v532 = vld [vmem:[#allocation2 + $0xbb0] sm:$0xff]
    %v533 = vld [vmem:[#allocation2 + $0xbb8] sm:$0xff]
    %v534 = vld [vmem:[#allocation2 + $0xbc0] sm:$0xff]
    %v535 = vld [vmem:[#allocation2 + $0xbc8] sm:$0xff]
    %v536 = vld [vmem:[#allocation2 + $0xbd0] sm:$0xff]
    %v537 = vld [vmem:[#allocation2 + $0xbd8] sm:$0xff]
    %v538 = vld [vmem:[#allocation2 + $0xbe0] sm:$0xff]
    %v539 = vld [vmem:[#allocation2 + $0xbe8] sm:$0xff]
    %v540 = vld [vmem:[#allocation2 + $0xbf0] sm:$0xff]
    %v541 = vld [vmem:[#allocation2 + $0xbf8] sm:$0xff]
    %v542 = vld [vmem:[#allocation5] sm:$0xf]
    %v544 = vlaneseq
    %v545 = vshrl.u32 %v544, 7
    %v546 = vsub.s32 0, %v545
    %v547 = vrot.slane %v542, %v546
    %v548 = vlaneseq
    %v549 = vshrl.u32 %v548, 7
    %v550 = vsub.s32 1, %v549
    %v551 = vrot.slane %v542, %v550
    %v552 = vlaneseq
    %v553 = vshrl.u32 %v552, 7
    %v554 = vsub.s32 2, %v553
    %v555 = vrot.slane %v542, %v554
    %v556 = vlaneseq
    %v557 = vshrl.u32 %v556, 7
    %v558 = vsub.s32 3, %v557
    %v559 = vrot.slane %v542, %v558
    %564 = vmatprep.subr.mxu0 %v159
    %565 = vmatpush1.msra.mxu0 %v158
    %566 = vmatprep.subr.mxu0 %v163
    %567 = vmatpush1.msra.mxu0 %v162
    %568 = vmatprep.subr.mxu0 %v167
    %569 = vmatpush1.msra.mxu0 %v166
    %570 = vmatprep.subr.mxu0 %v171
    %571 = vmatpush1.msra.mxu0 %v170
    %572 = vmatprep.subr.mxu0 %v175
    %573 = vmatpush1.msra.mxu0 %v174
    %574 = vmatprep.subr.mxu0 %v179
    %575 = vmatpush1.msra.mxu0 %v178
    %576 = vmatprep.subr.mxu0 %v183
    %577 = vmatpush1.msra.mxu0 %v182
    %578 = vmatprep.subr.mxu0 %v187
    %579 = vmatpush1.msra.mxu0 %v186
    %580 = vmatprep.subr.mxu0 %v191
    %581 = vmatpush1.msra.mxu0 %v190
    %582 = vmatprep.subr.mxu0 %v195
    %583 = vmatpush1.msra.mxu0 %v194
    %584 = vmatprep.subr.mxu0 %v199
    %585 = vmatpush1.msra.mxu0 %v198
    %586 = vmatprep.subr.mxu0 %v203
    %587 = vmatpush1.msra.mxu0 %v202
    %588 = vmatprep.subr.mxu0 %v207
    %589 = vmatpush1.msra.mxu0 %v206
    %590 = vmatprep.subr.mxu0 %v211
    %591 = vmatpush1.msra.mxu0 %v210
    %592 = vmatprep.subr.mxu0 %v215
    %593 = vmatpush1.msra.mxu0 %v214
    %594 = vmatprep.subr.mxu0 %v219
    %595 = vmatpush1.msra.mxu0 %v218
    %596 = vmatprep.subr.mxu0 %v223
    %597 = vmatpush1.msra.mxu0 %v222
    %598 = vmatprep.subr.mxu0 %v227
    %599 = vmatpush1.msra.mxu0 %v226
    %600 = vmatprep.subr.mxu0 %v231
    %601 = vmatpush1.msra.mxu0 %v230
    %602 = vmatprep.subr.mxu0 %v235
    %603 = vmatpush1.msra.mxu0 %v234
    %604 = vmatprep.subr.mxu0 %v239
    %605 = vmatpush1.msra.mxu0 %v238
    %606 = vmatprep.subr.mxu0 %v243
    %607 = vmatpush1.msra.mxu0 %v242
    %608 = vmatprep.subr.mxu0 %v247
    %609 = vmatpush1.msra.mxu0 %v246
    %610 = vmatprep.subr.mxu0 %v251
    %611 = vmatpush1.msra.mxu0 %v250
    %612 = vmatprep.subr.mxu0 %v255
    %613 = vmatpush1.msra.mxu0 %v254
    %614 = vmatprep.subr.mxu0 %v259
    %615 = vmatpush1.msra.mxu0 %v258
    %616 = vmatprep.subr.mxu0 %v263
    %617 = vmatpush1.msra.mxu0 %v262
    %618 = vmatprep.subr.mxu0 %v267
    %619 = vmatpush1.msra.mxu0 %v266
    %620 = vmatprep.subr.mxu0 %v271
    %621 = vmatpush1.msra.mxu0 %v270
    %622 = vmatprep.subr.mxu0 %v275
    %623 = vmatpush1.msra.mxu0 %v274
    %624 = vmatprep.subr.mxu0 %v279
    %625 = vmatpush1.msra.mxu0 %v278
    %626 = vmatprep.subr.mxu0 %v283
    %627 = vmatpush1.msra.mxu0 %v282
    %628 = vmatprep.mubr.f32.mxu0 %v153
    %629 = vmatmul.mubr.f32.gmra.mrb[0].mxu0 %v152
    %v630 = vpop.f32.mrb[0].mxu0
    %v631 = vadd.f32 %v547, %v630
    %v632 = vpop.f32.mrb[0].mxu0
    %v633 = vadd.f32 %v551, %v632
    %634 = vdwg.mxu0
    %635 = vmatprep.subr.mxu0 %v287
    %636 = vmatpush1.msra.mxu0 %v286
    %637 = vmatprep.subr.mxu0 %v291
    %638 = vmatpush1.msra.mxu0 %v290
    %639 = vmatprep.subr.mxu0 %v295
    %640 = vmatpush1.msra.mxu0 %v294
    %641 = vmatprep.subr.mxu0 %v299
    %642 = vmatpush1.msra.mxu0 %v298
    %643 = vmatprep.subr.mxu0 %v303
    %644 = vmatpush1.msra.mxu0 %v302
    %645 = vmatprep.subr.mxu0 %v307
    %646 = vmatpush1.msra.mxu0 %v306
    %647 = vmatprep.subr.mxu0 %v311
    %648 = vmatpush1.msra.mxu0 %v310
    %649 = vmatprep.subr.mxu0 %v315
    %650 = vmatpush1.msra.mxu0 %v314
    %651 = vmatprep.subr.mxu0 %v319
    %652 = vmatpush1.msra.mxu0 %v318
    %653 = vmatprep.subr.mxu0 %v323
    %654 = vmatpush1.msra.mxu0 %v322
    %655 = vmatprep.subr.mxu0 %v327
    %656 = vmatpush1.msra.mxu0 %v326
    %657 = vmatprep.subr.mxu0 %v331
    %658 = vmatpush1.msra.mxu0 %v330
    %659 = vmatprep.subr.mxu0 %v335
    %660 = vmatpush1.msra.mxu0 %v334
    %661 = vmatprep.subr.mxu0 %v339
    %662 = vmatpush1.msra.mxu0 %v338
    %663 = vmatprep.subr.mxu0 %v343
    %664 = vmatpush1.msra.mxu0 %v342
    %665 = vmatprep.subr.mxu0 %v347
    %666 = vmatpush1.msra.mxu0 %v346
    %667 = vmatprep.subr.mxu0 %v351
    %668 = vmatpush1.msra.mxu0 %v350
    %669 = vmatprep.subr.mxu0 %v355
    %670 = vmatpush1.msra.mxu0 %v354
    %671 = vmatprep.subr.mxu0 %v359
    %672 = vmatpush1.msra.mxu0 %v358
    %673 = vmatprep.subr.mxu0 %v363
    %674 = vmatpush1.msra.mxu0 %v362
    %675 = vmatprep.subr.mxu0 %v367
    %676 = vmatpush1.msra.mxu0 %v366
    %677 = vmatprep.subr.mxu0 %v371
    %678 = vmatpush1.msra.mxu0 %v370
    %679 = vmatprep.subr.mxu0 %v375
    %680 = vmatpush1.msra.mxu0 %v374
    %681 = vmatprep.subr.mxu0 %v379
    %682 = vmatpush1.msra.mxu0 %v378
    %683 = vmatprep.subr.mxu0 %v383
    %684 = vmatpush1.msra.mxu0 %v382
    %685 = vmatprep.subr.mxu0 %v387
    %686 = vmatpush1.msra.mxu0 %v386
    %687 = vmatprep.subr.mxu0 %v391
    %688 = vmatpush1.msra.mxu0 %v390
    %689 = vmatprep.subr.mxu0 %v395
    %690 = vmatpush1.msra.mxu0 %v394
    %691 = vmatprep.subr.mxu0 %v399
    %692 = vmatpush1.msra.mxu0 %v398
    %693 = vmatprep.subr.mxu0 %v403
    %694 = vmatpush1.msra.mxu0 %v402
    %695 = vmatprep.subr.mxu0 %v407
    %696 = vmatpush1.msra.mxu0 %v406
    %697 = vmatprep.subr.mxu0 %v411
    %698 = vmatpush1.msra.mxu0 %v410
    %699 = vmatprep.mubr.f32.mxu0 %v155
    %700 = vmatmul.mubr.f32.gmra.mrb[0].mxu0 %v154
    %v701 = vpop.f32.mrb[0].mxu0
    %v702 = vadd.f32 %v631, %v701
    %v703 = vpop.f32.mrb[0].mxu0
    %v704 = vadd.f32 %v633, %v703
    %705 = vdwg.mxu0
    %706 = vmatprep.subr.mxu0 %v415
    %707 = vmatpush1.msra.mxu0 %v414
    %708 = vmatprep.subr.mxu0 %v419
    %709 = vmatpush1.msra.mxu0 %v418
    %710 = vmatprep.subr.mxu0 %v423
    %711 = vmatpush1.msra.mxu0 %v422
    %712 = vmatprep.subr.mxu0 %v427
    %713 = vmatpush1.msra.mxu0 %v426
    %714 = vmatprep.subr.mxu0 %v431
    %715 = vmatpush1.msra.mxu0 %v430
    %716 = vmatprep.subr.mxu0 %v435
    %717 = vmatpush1.msra.mxu0 %v434
    %718 = vmatprep.subr.mxu0 %v439
    %719 = vmatpush1.msra.mxu0 %v438
    %720 = vmatprep.subr.mxu0 %v443
    %721 = vmatpush1.msra.mxu0 %v442
    %722 = vmatprep.subr.mxu0 %v447
    %723 = vmatpush1.msra.mxu0 %v446
    %724 = vmatprep.subr.mxu0 %v451
    %725 = vmatpush1.msra.mxu0 %v450
    %726 = vmatprep.subr.mxu0 %v455
    %727 = vmatpush1.msra.mxu0 %v454
    %728 = vmatprep.subr.mxu0 %v459
    %729 = vmatpush1.msra.mxu0 %v458
    %730 = vmatprep.subr.mxu0 %v463
    %731 = vmatpush1.msra.mxu0 %v462
    %732 = vmatprep.subr.mxu0 %v467
    %733 = vmatpush1.msra.mxu0 %v466
    %734 = vmatprep.subr.mxu0 %v471
    %735 = vmatpush1.msra.mxu0 %v470
    %736 = vmatprep.subr.mxu0 %v475
    %737 = vmatpush1.msra.mxu0 %v474
    %738 = vmatprep.subr.mxu0 %v479
    %739 = vmatpush1.msra.mxu0 %v478
    %740 = vmatprep.subr.mxu0 %v483
    %741 = vmatpush1.msra.mxu0 %v482
    %742 = vmatprep.subr.mxu0 %v487
    %743 = vmatpush1.msra.mxu0 %v486
    %744 = vmatprep.subr.mxu0 %v491
    %745 = vmatpush1.msra.mxu0 %v490
    %746 = vmatprep.subr.mxu0 %v495
    %747 = vmatpush1.msra.mxu0 %v494
    %748 = vmatprep.subr.mxu0 %v499
    %749 = vmatpush1.msra.mxu0 %v498
    %750 = vmatprep.subr.mxu0 %v503
    %751 = vmatpush1.msra.mxu0 %v502
    %752 = vmatprep.subr.mxu0 %v507
    %753 = vmatpush1.msra.mxu0 %v506
    %754 = vmatprep.subr.mxu0 %v511
    %755 = vmatpush1.msra.mxu0 %v510
    %756 = vmatprep.subr.mxu0 %v515
    %757 = vmatpush1.msra.mxu0 %v514
    %758 = vmatprep.subr.mxu0 %v519
    %759 = vmatpush1.msra.mxu0 %v518
    %760 = vmatprep.subr.mxu0 %v523
    %761 = vmatpush1.msra.mxu0 %v522
    %762 = vmatprep.subr.mxu0 %v527
    %763 = vmatpush1.msra.mxu0 %v526
    %764 = vmatprep.subr.mxu0 %v531
    %765 = vmatpush1.msra.mxu0 %v530
    %766 = vmatprep.subr.mxu0 %v535
    %767 = vmatpush1.msra.mxu0 %v534
    %768 = vmatprep.subr.mxu0 %v539
    %769 = vmatpush1.msra.mxu0 %v538
    %770 = vmatprep.mubr.f32.mxu0 %v157
    %771 = vmatmul.mubr.f32.gmra.mrb[0].mxu0 %v156
    %v772 = vpop.f32.mrb[0].mxu0
    %v773 = vadd.f32 %v702, %v772
    %v774 = vpop.f32.mrb[0].mxu0
    %v775 = vadd.f32 %v704, %v774
    %776 = vdwg.mxu0
    %777 = vmatprep.subr.mxu0 %v161
    %778 = vmatpush1.msra.mxu0 %v160
    %779 = vmatprep.subr.mxu0 %v165
    %780 = vmatpush1.msra.mxu0 %v164
    %781 = vmatprep.subr.mxu0 %v169
    %782 = vmatpush1.msra.mxu0 %v168
    %783 = vmatprep.subr.mxu0 %v173
    %784 = vmatpush1.msra.mxu0 %v172
    %785 = vmatprep.subr.mxu0 %v177
    %786 = vmatpush1.msra.mxu0 %v176
    %787 = vmatprep.subr.mxu0 %v181
    %788 = vmatpush1.msra.mxu0 %v180
    %789 = vmatprep.subr.mxu0 %v185
    %790 = vmatpush1.msra.mxu0 %v184
    %791 = vmatprep.subr.mxu0 %v189
    %792 = vmatpush1.msra.mxu0 %v188
    %793 = vmatprep.subr.mxu0 %v193
    %794 = vmatpush1.msra.mxu0 %v192
    %795 = vmatprep.subr.mxu0 %v197
    %796 = vmatpush1.msra.mxu0 %v196
    %797 = vmatprep.subr.mxu0 %v201
    %798 = vmatpush1.msra.mxu0 %v200
    %799 = vmatprep.subr.mxu0 %v205
    %800 = vmatpush1.msra.mxu0 %v204
    %801 = vmatprep.subr.mxu0 %v209
    %802 = vmatpush1.msra.mxu0 %v208
    %803 = vmatprep.subr.mxu0 %v213
    %804 = vmatpush1.msra.mxu0 %v212
    %805 = vmatprep.subr.mxu0 %v217
    %806 = vmatpush1.msra.mxu0 %v216
    %807 = vmatprep.subr.mxu0 %v221
    %808 = vmatpush1.msra.mxu0 %v220
    %809 = vmatprep.subr.mxu0 %v225
    %810 = vmatpush1.msra.mxu0 %v224
    %811 = vmatprep.subr.mxu0 %v229
    %812 = vmatpush1.msra.mxu0 %v228
    %813 = vmatprep.subr.mxu0 %v233
    %814 = vmatpush1.msra.mxu0 %v232
    %815 = vmatprep.subr.mxu0 %v237
    %816 = vmatpush1.msra.mxu0 %v236
    %817 = vmatprep.subr.mxu0 %v241
    %818 = vmatpush1.msra.mxu0 %v240
    %819 = vmatprep.subr.mxu0 %v245
    %820 = vmatpush1.msra.mxu0 %v244
    %821 = vmatprep.subr.mxu0 %v249
    %822 = vmatpush1.msra.mxu0 %v248
    %823 = vmatprep.subr.mxu0 %v253
    %824 = vmatpush1.msra.mxu0 %v252
    %825 = vmatprep.subr.mxu0 %v257
    %826 = vmatpush1.msra.mxu0 %v256
    %827 = vmatprep.subr.mxu0 %v261
    %828 = vmatpush1.msra.mxu0 %v260
    %829 = vmatprep.subr.mxu0 %v265
    %830 = vmatpush1.msra.mxu0 %v264
    %831 = vmatprep.subr.mxu0 %v269
    %832 = vmatpush1.msra.mxu0 %v268
    %833 = vmatprep.subr.mxu0 %v273
    %834 = vmatpush1.msra.mxu0 %v272
    %835 = vmatprep.subr.mxu0 %v277
    %836 = vmatpush1.msra.mxu0 %v276
    %837 = vmatprep.subr.mxu0 %v281
    %838 = vmatpush1.msra.mxu0 %v280
    %839 = vmatprep.subr.mxu0 %v285
    %840 = vmatpush1.msra.mxu0 %v284
    %841 = vmatprep.mubr.f32.mxu0 %v153
    %842 = vmatmul.mubr.f32.gmra.mrb[0].mxu0 %v152
    %v843 = vpop.f32.mrb[0].mxu0
    %v844 = vadd.f32 %v555, %v843
    %v845 = vpop.f32.mrb[0].mxu0
    %v846 = vadd.f32 %v559, %v845
    %847 = vdwg.mxu0
    %848 = vmatprep.subr.mxu0 %v289
    %849 = vmatpush1.msra.mxu0 %v288
    %850 = vmatprep.subr.mxu0 %v293
    %851 = vmatpush1.msra.mxu0 %v292
    %852 = vmatprep.subr.mxu0 %v297
    %853 = vmatpush1.msra.mxu0 %v296
    %854 = vmatprep.subr.mxu0 %v301
    %855 = vmatpush1.msra.mxu0 %v300
    %856 = vmatprep.subr.mxu0 %v305
    %857 = vmatpush1.msra.mxu0 %v304
    %858 = vmatprep.subr.mxu0 %v309
    %859 = vmatpush1.msra.mxu0 %v308
    %860 = vmatprep.subr.mxu0 %v313
    %861 = vmatpush1.msra.mxu0 %v312
    %862 = vmatprep.subr.mxu0 %v317
    %863 = vmatpush1.msra.mxu0 %v316
    %864 = vmatprep.subr.mxu0 %v321
    %865 = vmatpush1.msra.mxu0 %v320
    %866 = vmatprep.subr.mxu0 %v325
    %867 = vmatpush1.msra.mxu0 %v324
    %868 = vmatprep.subr.mxu0 %v329
    %869 = vmatpush1.msra.mxu0 %v328
    %870 = vmatprep.subr.mxu0 %v333
    %871 = vmatpush1.msra.mxu0 %v332
    %872 = vmatprep.subr.mxu0 %v337
    %873 = vmatpush1.msra.mxu0 %v336
    %874 = vmatprep.subr.mxu0 %v341
    %875 = vmatpush1.msra.mxu0 %v340
    %876 = vmatprep.subr.mxu0 %v345
    %877 = vmatpush1.msra.mxu0 %v344
    %878 = vmatprep.subr.mxu0 %v349
    %879 = vmatpush1.msra.mxu0 %v348
    %880 = vmatprep.subr.mxu0 %v353
    %881 = vmatpush1.msra.mxu0 %v352
    %882 = vmatprep.subr.mxu0 %v357
    %883 = vmatpush1.msra.mxu0 %v356
    %884 = vmatprep.subr.mxu0 %v361
    %885 = vmatpush1.msra.mxu0 %v360
    %886 = vmatprep.subr.mxu0 %v365
    %887 = vmatpush1.msra.mxu0 %v364
    %888 = vmatprep.subr.mxu0 %v369
    %889 = vmatpush1.msra.mxu0 %v368
    %890 = vmatprep.subr.mxu0 %v373
    %891 = vmatpush1.msra.mxu0 %v372
    %892 = vmatprep.subr.mxu0 %v377
    %893 = vmatpush1.msra.mxu0 %v376
    %894 = vmatprep.subr.mxu0 %v381
    %895 = vmatpush1.msra.mxu0 %v380
    %896 = vmatprep.subr.mxu0 %v385
    %897 = vmatpush1.msra.mxu0 %v384
    %898 = vmatprep.subr.mxu0 %v389
    %899 = vmatpush1.msra.mxu0 %v388
    %900 = vmatprep.subr.mxu0 %v393
    %901 = vmatpush1.msra.mxu0 %v392
    %902 = vmatprep.subr.mxu0 %v397
    %903 = vmatpush1.msra.mxu0 %v396
    %904 = vmatprep.subr.mxu0 %v401
    %905 = vmatpush1.msra.mxu0 %v400
    %906 = vmatprep.subr.mxu0 %v405
    %907 = vmatpush1.msra.mxu0 %v404
    %908 = vmatprep.subr.mxu0 %v409
    %909 = vmatpush1.msra.mxu0 %v408
    %910 = vmatprep.subr.mxu0 %v413
    %911 = vmatpush1.msra.mxu0 %v412
    %912 = vmatprep.mubr.f32.mxu0 %v155
    %913 = vmatmul.mubr.f32.gmra.mrb[0].mxu0 %v154
    %v914 = vpop.f32.mrb[0].mxu0
    %v915 = vadd.f32 %v844, %v914
    %v916 = vpop.f32.mrb[0].mxu0
    %v917 = vadd.f32 %v846, %v916
    %918 = vdwg.mxu0
    %919 = vmatprep.subr.mxu0 %v417
    %920 = vmatpush1.msra.mxu0 %v416
    %921 = vmatprep.subr.mxu0 %v421
    %922 = vmatpush1.msra.mxu0 %v420
    %923 = vmatprep.subr.mxu0 %v425
    %924 = vmatpush1.msra.mxu0 %v424
    %925 = vmatprep.subr.mxu0 %v429
    %926 = vmatpush1.msra.mxu0 %v428
    %927 = vmatprep.subr.mxu0 %v433
    %928 = vmatpush1.msra.mxu0 %v432
    %929 = vmatprep.subr.mxu0 %v437
    %930 = vmatpush1.msra.mxu0 %v436
    %931 = vmatprep.subr.mxu0 %v441
    %932 = vmatpush1.msra.mxu0 %v440
    %933 = vmatprep.subr.mxu0 %v445
    %934 = vmatpush1.msra.mxu0 %v444
    %935 = vmatprep.subr.mxu0 %v449
    %936 = vmatpush1.msra.mxu0 %v448
    %937 = vmatprep.subr.mxu0 %v453
    %938 = vmatpush1.msra.mxu0 %v452
    %939 = vmatprep.subr.mxu0 %v457
    %940 = vmatpush1.msra.mxu0 %v456
    %941 = vmatprep.subr.mxu0 %v461
    %942 = vmatpush1.msra.mxu0 %v460
    %943 = vmatprep.subr.mxu0 %v465
    %944 = vmatpush1.msra.mxu0 %v464
    %945 = vmatprep.subr.mxu0 %v469
    %946 = vmatpush1.msra.mxu0 %v468
    %947 = vmatprep.subr.mxu0 %v473
    %948 = vmatpush1.msra.mxu0 %v472
    %949 = vmatprep.subr.mxu0 %v477
    %950 = vmatpush1.msra.mxu0 %v476
    %951 = vmatprep.subr.mxu0 %v481
    %952 = vmatpush1.msra.mxu0 %v480
    %953 = vmatprep.subr.mxu0 %v485
    %954 = vmatpush1.msra.mxu0 %v484
    %955 = vmatprep.subr.mxu0 %v489
    %956 = vmatpush1.msra.mxu0 %v488
    %957 = vmatprep.subr.mxu0 %v493
    %958 = vmatpush1.msra.mxu0 %v492
    %959 = vmatprep.subr.mxu0 %v497
    %960 = vmatpush1.msra.mxu0 %v496
    %961 = vmatprep.subr.mxu0 %v501
    %962 = vmatpush1.msra.mxu0 %v500
    %963 = vmatprep.subr.mxu0 %v505
    %964 = vmatpush1.msra.mxu0 %v504
    %965 = vmatprep.subr.mxu0 %v509
    %966 = vmatpush1.msra.mxu0 %v508
    %967 = vmatprep.subr.mxu0 %v513
    %968 = vmatpush1.msra.mxu0 %v512
    %969 = vmatprep.subr.mxu0 %v517
    %970 = vmatpush1.msra.mxu0 %v516
    %971 = vmatprep.subr.mxu0 %v521
    %972 = vmatpush1.msra.mxu0 %v520
    %973 = vmatprep.subr.mxu0 %v525
    %974 = vmatpush1.msra.mxu0 %v524
    %975 = vmatprep.subr.mxu0 %v529
    %976 = vmatpush1.msra.mxu0 %v528
    %977 = vmatprep.subr.mxu0 %v533
    %978 = vmatpush1.msra.mxu0 %v532
    %979 = vmatprep.subr.mxu0 %v537
    %980 = vmatpush1.msra.mxu0 %v536
    %981 = vmatprep.subr.mxu0 %v541
    %982 = vmatpush1.msra.mxu0 %v540
    %983 = vmatprep.mubr.f32.mxu0 %v157
    %984 = vmatmul.mubr.f32.gmra.mrb[0].mxu0 %v156
    %v985 = vpop.f32.mrb[0].mxu0
    %v986 = vadd.f32 %v915, %v985
    %v987 = vpop.f32.mrb[0].mxu0
    %v988 = vadd.f32 %v917, %v987
    %989 = vdwg.mxu0
    %v990 = vmax.f32 %v773, 0.0
    %v991 = vmax.f32 %v775, 0.0
    %v992 = vmax.f32 %v986, 0.0
    %v993 = vmax.f32 %v988, 0.0
    %v994 = vld [vmem:[#allocation7] sm:$0xff]
    %v995 = vld [vmem:[#allocation7 + $0x8] sm:$0xff]
    %v996 = vld [vmem:[#allocation7 + $0x10] sm:$0xff]
    %v997 = vld [vmem:[#allocation7 + $0x18] sm:$0xff]
    %v998 = vld [vmem:[#allocation7 + $0x20] sm:$0xff]
    %v999 = vld [vmem:[#allocation7 + $0x28] sm:$0xff]
    %v1000 = vld [vmem:[#allocation7 + $0x30] sm:$0xff]
    %v1001 = vld [vmem:[#allocation7 + $0x38] sm:$0xff]
    %v1002 = vld [vmem:[#allocation7 + $0x40] sm:$0xff]
    %v1003 = vld [vmem:[#allocation7 + $0x48] sm:$0xff]
    %v1004 = vld [vmem:[#allocation7 + $0x50] sm:$0xff]
    %v1005 = vld [vmem:[#allocation7 + $0x58] sm:$0xff]
    %v1006 = vld [vmem:[#allocation7 + $0x60] sm:$0xff]
    %v1007 = vld [vmem:[#allocation7 + $0x68] sm:$0xff]
    %v1008 = vld [vmem:[#allocation7 + $0x70] sm:$0xff]
    %v1009 = vld [vmem:[#allocation7 + $0x78] sm:$0xff]
    %v1010 = vld [vmem:[#allocation7 + $0x80] sm:$0xff]
    %v1011 = vld [vmem:[#allocation7 + $0x88] sm:$0xff]
    %v1012 = vld [vmem:[#allocation7 + $0x90] sm:$0xff]
    %v1013 = vld [vmem:[#allocation7 + $0x98] sm:$0xff]
    %v1014 = vld [vmem:[#allocation7 + $0xa0] sm:$0xff]
    %v1015 = vld [vmem:[#allocation7 + $0xa8] sm:$0xff]
    %v1016 = vld [vmem:[#allocation7 + $0xb0] sm:$0xff]
    %v1017 = vld [vmem:[#allocation7 + $0xb8] sm:$0xff]
    %v1018 = vld [vmem:[#allocation7 + $0xc0] sm:$0xff]
    %v1019 = vld [vmem:[#allocation7 + $0xc8] sm:$0xff]
    %v1020 = vld [vmem:[#allocation7 + $0xd0] sm:$0xff]
    %v1021 = vld [vmem:[#allocation7 + $0xd8] sm:$0xff]
    %v1022 = vld [vmem:[#allocation7 + $0xe0] sm:$0xff]
    %v1023 = vld [vmem:[#allocation7 + $0xe8] sm:$0xff]
    %v1024 = vld [vmem:[#allocation7 + $0xf0] sm:$0xff]
    %v1025 = vld [vmem:[#allocation7 + $0xf8] sm:$0xff]
    %v1026 = vld [vmem:[#allocation7 + $0x100] sm:$0xff]
    %v1027 = vld [vmem:[#allocation7 + $0x108] sm:$0xff]
    %v1028 = vld [vmem:[#allocation7 + $0x110] sm:$0xff]
    %v1029 = vld [vmem:[#allocation7 + $0x118] sm:$0xff]
    %v1030 = vld [vmem:[#allocation7 + $0x120] sm:$0xff]
    %v1031 = vld [vmem:[#allocation7 + $0x128] sm:$0xff]
    %v1032 = vld [vmem:[#allocation7 + $0x130] sm:$0xff]
    %v1033 = vld [vmem:[#allocation7 + $0x138] sm:$0xff]
    %v1034 = vld [vmem:[#allocation7 + $0x140] sm:$0xff]
    %v1035 = vld [vmem:[#allocation7 + $0x148] sm:$0xff]
    %v1036 = vld [vmem:[#allocation7 + $0x150] sm:$0xff]
    %v1037 = vld [vmem:[#allocation7 + $0x158] sm:$0xff]
    %v1038 = vld [vmem:[#allocation7 + $0x160] sm:$0xff]
    %v1039 = vld [vmem:[#allocation7 + $0x168] sm:$0xff]
    %v1040 = vld [vmem:[#allocation7 + $0x170] sm:$0xff]
    %v1041 = vld [vmem:[#allocation7 + $0x178] sm:$0xff]
    %v1042 = vld [vmem:[#allocation7 + $0x180] sm:$0xff]
    %v1043 = vld [vmem:[#allocation7 + $0x188] sm:$0xff]
    %v1044 = vld [vmem:[#allocation7 + $0x190] sm:$0xff]
    %v1045 = vld [vmem:[#allocation7 + $0x198] sm:$0xff]
    %v1046 = vld [vmem:[#allocation7 + $0x1a0] sm:$0xff]
    %v1047 = vld [vmem:[#allocation7 + $0x1a8] sm:$0xff]
    %v1048 = vld [vmem:[#allocation7 + $0x1b0] sm:$0xff]
    %v1049 = vld [vmem:[#allocation7 + $0x1b8] sm:$0xff]
    %v1050 = vld [vmem:[#allocation7 + $0x1c0] sm:$0xff]
    %v1051 = vld [vmem:[#allocation7 + $0x1c8] sm:$0xff]
    %v1052 = vld [vmem:[#allocation7 + $0x1d0] sm:$0xff]
    %v1053 = vld [vmem:[#allocation7 + $0x1d8] sm:$0xff]
    %v1054 = vld [vmem:[#allocation7 + $0x1e0] sm:$0xff]
    %v1055 = vld [vmem:[#allocation7 + $0x1e8] sm:$0xff]
    %v1056 = vld [vmem:[#allocation7 + $0x1f0] sm:$0xff]
    %v1057 = vld [vmem:[#allocation7 + $0x1f8] sm:$0xff]
    %v1058 = vld [vmem:[#allocation8] sm:$0x1]
    %v1060 = vlaneseq
    %v1061 = vshrl.u32 %v1060, 7
    %v1062 = vsub.s32 0, %v1061
    %v1063 = vrot.slane %v1058, %v1062
    %1065 = vmatprep.subr.mxu0 0.0
    %1066 = vmatpush1.msra.mxu0 %v994
    %1067 = vmatprep.subr.mxu0 0.0
    %1068 = vmatpush1.msra.mxu0 %v995
    %1069 = vmatprep.subr.mxu0 0.0
    %1070 = vmatpush1.msra.mxu0 %v996
    %1071 = vmatprep.subr.mxu0 0.0
    %1072 = vmatpush1.msra.mxu0 %v997
    %1073 = vmatprep.subr.mxu0 0.0
    %1074 = vmatpush1.msra.mxu0 %v998
    %1075 = vmatprep.subr.mxu0 0.0
    %1076 = vmatpush1.msra.mxu0 %v999
    %1077 = vmatprep.subr.mxu0 0.0
    %1078 = vmatpush1.msra.mxu0 %v1000
    %1079 = vmatprep.subr.mxu0 0.0
    %1080 = vmatpush1.msra.mxu0 %v1001
    %1081 = vmatprep.subr.mxu0 0.0
    %1082 = vmatpush1.msra.mxu0 %v1002
    %1083 = vmatprep.subr.mxu0 0.0
    %1084 = vmatpush1.msra.mxu0 %v1003
    %1085 = vmatprep.subr.mxu0 0.0
    %1086 = vmatpush1.msra.mxu0 %v1004
    %1087 = vmatprep.subr.mxu0 0.0
    %1088 = vmatpush1.msra.mxu0 %v1005
    %1089 = vmatprep.subr.mxu0 0.0
    %1090 = vmatpush1.msra.mxu0 %v1006
    %1091 = vmatprep.subr.mxu0 0.0
    %1092 = vmatpush1.msra.mxu0 %v1007
    %1093 = vmatprep.subr.mxu0 0.0
    %1094 = vmatpush1.msra.mxu0 %v1008
    %1095 = vmatprep.subr.mxu0 0.0
    %1096 = vmatpush1.msra.mxu0 %v1009
    %1097 = vmatprep.subr.mxu0 0.0
    %1098 = vmatpush1.msra.mxu0 %v1010
    %1099 = vmatprep.subr.mxu0 0.0
    %1100 = vmatpush1.msra.mxu0 %v1011
    %1101 = vmatprep.subr.mxu0 0.0
    %1102 = vmatpush1.msra.mxu0 %v1012
    %1103 = vmatprep.subr.mxu0 0.0
    %1104 = vmatpush1.msra.mxu0 %v1013
    %1105 = vmatprep.subr.mxu0 0.0
    %1106 = vmatpush1.msra.mxu0 %v1014
    %1107 = vmatprep.subr.mxu0 0.0
    %1108 = vmatpush1.msra.mxu0 %v1015
    %1109 = vmatprep.subr.mxu0 0.0
    %1110 = vmatpush1.msra.mxu0 %v1016
    %1111 = vmatprep.subr.mxu0 0.0
    %1112 = vmatpush1.msra.mxu0 %v1017
    %1113 = vmatprep.subr.mxu0 0.0
    %1114 = vmatpush1.msra.mxu0 %v1018
    %1115 = vmatprep.subr.mxu0 0.0
    %1116 = vmatpush1.msra.mxu0 %v1019
    %1117 = vmatprep.subr.mxu0 0.0
    %1118 = vmatpush1.msra.mxu0 %v1020
    %1119 = vmatprep.subr.mxu0 0.0
    %1120 = vmatpush1.msra.mxu0 %v1021
    %1121 = vmatprep.subr.mxu0 0.0
    %1122 = vmatpush1.msra.mxu0 %v1022
    %1123 = vmatprep.subr.mxu0 0.0
    %1124 = vmatpush1.msra.mxu0 %v1023
    %1125 = vmatprep.subr.mxu0 0.0
    %1126 = vmatpush1.msra.mxu0 %v1024
    %1127 = vmatprep.subr.mxu0 0.0
    %1128 = vmatpush1.msra.mxu0 %v1025
    %1129 = vmatprep.mubr.f32.mxu0 %v991
    %1130 = vmatmul.mubr.f32.gmra.mrb[0].mxu0 %v990
    %v1131 = vpop.f32.mrb[0].mxu0
    %v1132 = vadd.f32 %v1063, %v1131
    %v1133 = vpop.f32.mrb[0].mxu0
    %1134 = vdwg.mxu0
    %1135 = vmatprep.subr.mxu0 0.0
    %1136 = vmatpush1.msra.mxu0 %v1026
    %1137 = vmatprep.subr.mxu0 0.0
    %1138 = vmatpush1.msra.mxu0 %v1027
    %1139 = vmatprep.subr.mxu0 0.0
    %1140 = vmatpush1.msra.mxu0 %v1028
    %1141 = vmatprep.subr.mxu0 0.0
    %1142 = vmatpush1.msra.mxu0 %v1029
    %1143 = vmatprep.subr.mxu0 0.0
    %1144 = vmatpush1.msra.mxu0 %v1030
    %1145 = vmatprep.subr.mxu0 0.0
    %1146 = vmatpush1.msra.mxu0 %v1031
    %1147 = vmatprep.subr.mxu0 0.0
    %1148 = vmatpush1.msra.mxu0 %v1032
    %1149 = vmatprep.subr.mxu0 0.0
    %1150 = vmatpush1.msra.mxu0 %v1033
    %1151 = vmatprep.subr.mxu0 0.0
    %1152 = vmatpush1.msra.mxu0 %v1034
    %1153 = vmatprep.subr.mxu0 0.0
    %1154 = vmatpush1.msra.mxu0 %v1035
    %1155 = vmatprep.subr.mxu0 0.0
    %1156 = vmatpush1.msra.mxu0 %v1036
    %1157 = vmatprep.subr.mxu0 0.0
    %1158 = vmatpush1.msra.mxu0 %v1037
    %1159 = vmatprep.subr.mxu0 0.0
    %1160 = vmatpush1.msra.mxu0 %v1038
    %1161 = vmatprep.subr.mxu0 0.0
    %1162 = vmatpush1.msra.mxu0 %v1039
    %1163 = vmatprep.subr.mxu0 0.0
    %1164 = vmatpush1.msra.mxu0 %v1040
    %1165 = vmatprep.subr.mxu0 0.0
    %1166 = vmatpush1.msra.mxu0 %v1041
    %1167 = vmatprep.subr.mxu0 0.0
    %1168 = vmatpush1.msra.mxu0 %v1042
    %1169 = vmatprep.subr.mxu0 0.0
    %1170 = vmatpush1.msra.mxu0 %v1043
    %1171 = vmatprep.subr.mxu0 0.0
    %1172 = vmatpush1.msra.mxu0 %v1044
    %1173 = vmatprep.subr.mxu0 0.0
    %1174 = vmatpush1.msra.mxu0 %v1045
    %1175 = vmatprep.subr.mxu0 0.0
    %1176 = vmatpush1.msra.mxu0 %v1046
    %1177 = vmatprep.subr.mxu0 0.0
    %1178 = vmatpush1.msra.mxu0 %v1047
    %1179 = vmatprep.subr.mxu0 0.0
    %1180 = vmatpush1.msra.mxu0 %v1048
    %1181 = vmatprep.subr.mxu0 0.0
    %1182 = vmatpush1.msra.mxu0 %v1049
    %1183 = vmatprep.subr.mxu0 0.0
    %1184 = vmatpush1.msra.mxu0 %v1050
    %1185 = vmatprep.subr.mxu0 0.0
    %1186 = vmatpush1.msra.mxu0 %v1051
    %1187 = vmatprep.subr.mxu0 0.0
    %1188 = vmatpush1.msra.mxu0 %v1052
    %1189 = vmatprep.subr.mxu0 0.0
    %1190 = vmatpush1.msra.mxu0 %v1053
    %1191 = vmatprep.subr.mxu0 0.0
    %1192 = vmatpush1.msra.mxu0 %v1054
    %1193 = vmatprep.subr.mxu0 0.0
    %1194 = vmatpush1.msra.mxu0 %v1055
    %1195 = vmatprep.subr.mxu0 0.0
    %1196 = vmatpush1.msra.mxu0 %v1056
    %1197 = vmatprep.subr.mxu0 0.0
    %1198 = vmatpush1.msra.mxu0 %v1057
    %1199 = vmatprep.mubr.f32.mxu0 %v993
    %1200 = vmatmul.mubr.f32.gmra.mrb[0].mxu0 %v992
    %v1201 = vpop.f32.mrb[0].mxu0
    %v1202 = vadd.f32 %v1132, %v1201
    %v1203 = vpop.f32.mrb[0].mxu0
    %1204 = vdwg.mxu0
    %v1205 = vmax.f32 %v1202, 0.0
    %v1206 = vld [vmem:[#allocation10] sm:$0xff]
    %v1207 = vld [vmem:[#allocation10 + $0x8] sm:$0xff]
    %v1208 = vld [vmem:[#allocation10 + $0x10] sm:$0xff]
    %v1209 = vld [vmem:[#allocation10 + $0x18] sm:$0xff]
    %v1210 = vld [vmem:[#allocation10 + $0x20] sm:$0xff]
    %v1211 = vld [vmem:[#allocation10 + $0x28] sm:$0xff]
    %v1212 = vld [vmem:[#allocation10 + $0x30] sm:$0xff]
    %v1213 = vld [vmem:[#allocation10 + $0x38] sm:$0xff]
    %v1214 = vld [vmem:[#allocation10 + $0x40] sm:$0xff]
    %v1215 = vld [vmem:[#allocation10 + $0x48] sm:$0xff]
    %v1216 = vld [vmem:[#allocation10 + $0x50] sm:$0xff]
    %v1217 = vld [vmem:[#allocation10 + $0x58] sm:$0xff]
    %v1218 = vld [vmem:[#allocation10 + $0x60] sm:$0xff]
    %v1219 = vld [vmem:[#allocation10 + $0x68] sm:$0xff]
    %v1220 = vld [vmem:[#allocation10 + $0x70] sm:$0xff]
    %v1221 = vld [vmem:[#allocation10 + $0x78] sm:$0xff]
    %v1222 = vld [vmem:[#allocation11] sm:$0x1]
    %v1224 = vlaneseq
    %v1225 = vshrl.u32 %v1224, 7
    %v1226 = vsub.s32 0, %v1225
    %v1227 = vrot.slane %v1222, %v1226
    %1229 = vmatprep.subr.mxu0 0.0
    %1230 = vmatpush1.msra.mxu0 %v1206
    %1231 = vmatprep.subr.mxu0 0.0
    %1232 = vmatpush1.msra.mxu0 %v1207
    %1233 = vmatprep.subr.mxu0 0.0
    %1234 = vmatpush1.msra.mxu0 %v1208
    %1235 = vmatprep.subr.mxu0 0.0
    %1236 = vmatpush1.msra.mxu0 %v1209
    %1237 = vmatprep.subr.mxu0 0.0
    %1238 = vmatpush1.msra.mxu0 %v1210
    %1239 = vmatprep.subr.mxu0 0.0
    %1240 = vmatpush1.msra.mxu0 %v1211
    %1241 = vmatprep.subr.mxu0 0.0
    %1242 = vmatpush1.msra.mxu0 %v1212
    %1243 = vmatprep.subr.mxu0 0.0
    %1244 = vmatpush1.msra.mxu0 %v1213
    %1245 = vmatprep.subr.mxu0 0.0
    %1246 = vmatpush1.msra.mxu0 %v1214
    %1247 = vmatprep.subr.mxu0 0.0
    %1248 = vmatpush1.msra.mxu0 %v1215
    %1249 = vmatprep.subr.mxu0 0.0
    %1250 = vmatpush1.msra.mxu0 %v1216
    %1251 = vmatprep.subr.mxu0 0.0
    %1252 = vmatpush1.msra.mxu0 %v1217
    %1253 = vmatprep.subr.mxu0 0.0
    %1254 = vmatpush1.msra.mxu0 %v1218
    %1255 = vmatprep.subr.mxu0 0.0
    %1256 = vmatpush1.msra.mxu0 %v1219
    %1257 = vmatprep.subr.mxu0 0.0
    %1258 = vmatpush1.msra.mxu0 %v1220
    %1259 = vmatprep.subr.mxu0 0.0
    %1260 = vmatpush1.msra.mxu0 %v1221
    %1261 = vmatprep.subr.mxu0 0.0
    %1262 = vmatpush1.msra.mxu0 0.0
    %1263 = vmatprep.subr.mxu0 0.0
    %1264 = vmatpush1.msra.mxu0 0.0
    %1265 = vmatprep.subr.mxu0 0.0
    %1266 = vmatpush1.msra.mxu0 0.0
    %1267 = vmatprep.subr.mxu0 0.0
    %1268 = vmatpush1.msra.mxu0 0.0
    %1269 = vmatprep.subr.mxu0 0.0
    %1270 = vmatpush1.msra.mxu0 0.0
    %1271 = vmatprep.subr.mxu0 0.0
    %1272 = vmatpush1.msra.mxu0 0.0
    %1273 = vmatprep.subr.mxu0 0.0
    %1274 = vmatpush1.msra.mxu0 0.0
    %1275 = vmatprep.subr.mxu0 0.0
    %1276 = vmatpush1.msra.mxu0 0.0
    %1277 = vmatprep.subr.mxu0 0.0
    %1278 = vmatpush1.msra.mxu0 0.0
    %1279 = vmatprep.subr.mxu0 0.0
    %1280 = vmatpush1.msra.mxu0 0.0
    %1281 = vmatprep.subr.mxu0 0.0
    %1282 = vmatpush1.msra.mxu0 0.0
    %1283 = vmatprep.subr.mxu0 0.0
    %1284 = vmatpush1.msra.mxu0 0.0
    %1285 = vmatprep.subr.mxu0 0.0
    %1286 = vmatpush1.msra.mxu0 0.0
    %1287 = vmatprep.subr.mxu0 0.0
    %1288 = vmatpush1.msra.mxu0 0.0
    %1289 = vmatprep.subr.mxu0 0.0
    %1290 = vmatpush1.msra.mxu0 0.0
    %1291 = vmatprep.subr.mxu0 0.0
    %1292 = vmatpush1.msra.mxu0 0.0
    %1293 = vmatprep.mubr.f32.mxu0 0.0
    %1294 = vmatmul.mubr.f32.gmra.mrb[0].mxu0 %v1205
    %v1295 = vpop.f32.mrb[0].mxu0
    %v1296 = vadd.f32 %v1227, %v1295
    %v1297 = vpop.f32.mrb[0].mxu0
    %1298 = vdwg.mxu0
    %v1299 = vmax.f32 %v1296, 0.0
    %v1300 = vld [vmem:[#allocation13] sm:$0xff]
    %v1301 = vld [vmem:[#allocation13 + $0x8] sm:$0xff]
    %v1302 = vld [vmem:[#allocation13 + $0x10] sm:$0xff]
    %v1303 = vld [vmem:[#allocation13 + $0x18] sm:$0xff]
    %v1304 = vld [vmem:[#allocation13 + $0x20] sm:$0xff]
    %v1305 = vld [vmem:[#allocation13 + $0x28] sm:$0xff]
    %v1306 = vld [vmem:[#allocation13 + $0x30] sm:$0xff]
    %v1307 = vld [vmem:[#allocation13 + $0x38] sm:$0xff]
    %v1308 = vld [vmem:[#allocation13 + $0x40] sm:$0xff]
    %v1309 = vld [vmem:[#allocation13 + $0x48] sm:$0xff]
    %v1310 = vld [vmem:[#allocation13 + $0x50] sm:$0xff]
    %v1311 = vld [vmem:[#allocation13 + $0x58] sm:$0xff]
    %v1312 = vld [vmem:[#allocation13 + $0x60] sm:$0xff]
    %v1313 = vld [vmem:[#allocation13 + $0x68] sm:$0xff]
    %v1314 = vld [vmem:[#allocation13 + $0x70] sm:$0xff]
    %v1315 = vld [vmem:[#allocation13 + $0x78] sm:$0xff]
    %v1316 = vld [vmem:[#allocation13 + $0x80] sm:$0xff]
    %v1317 = vld [vmem:[#allocation13 + $0x88] sm:$0xff]
    %v1318 = vld [vmem:[#allocation13 + $0x90] sm:$0xff]
    %v1319 = vld [vmem:[#allocation13 + $0x98] sm:$0xff]
    %v1320 = vld [vmem:[#allocation13 + $0xa0] sm:$0xff]
    %v1321 = vld [vmem:[#allocation13 + $0xa8] sm:$0xff]
    %v1322 = vld [vmem:[#allocation13 + $0xb0] sm:$0xff]
    %v1323 = vld [vmem:[#allocation13 + $0xb8] sm:$0xff]
    %v1324 = vld [vmem:[#allocation13 + $0xc0] sm:$0xff]
    %v1325 = vld [vmem:[#allocation13 + $0xc8] sm:$0xff]
    %v1326 = vld [vmem:[#allocation13 + $0xd0] sm:$0xff]
    %v1327 = vld [vmem:[#allocation13 + $0xd8] sm:$0xff]
    %v1328 = vld [vmem:[#allocation13 + $0xe0] sm:$0xff]
    %v1329 = vld [vmem:[#allocation13 + $0xe8] sm:$0xff]
    %v1330 = vld [vmem:[#allocation13 + $0xf0] sm:$0xff]
    %v1331 = vld [vmem:[#allocation13 + $0xf8] sm:$0xff]
    %v1332 = vld [vmem:[#allocation14] sm:$0x3]
    %v1334 = vlaneseq
    %v1335 = vshrl.u32 %v1334, 7
    %v1336 = vsub.s32 0, %v1335
    %v1337 = vrot.slane %v1332, %v1336
    %v1338 = vlaneseq
    %v1339 = vshrl.u32 %v1338, 7
    %v1340 = vsub.s32 1, %v1339
    %v1341 = vrot.slane %v1332, %v1340
    %1344 = vmatprep.subr.mxu0 %v1301
    %1345 = vmatpush1.msra.mxu0 %v1300
    %1346 = vmatprep.subr.mxu0 %v1303
    %1347 = vmatpush1.msra.mxu0 %v1302
    %1348 = vmatprep.subr.mxu0 %v1305
    %1349 = vmatpush1.msra.mxu0 %v1304
    %1350 = vmatprep.subr.mxu0 %v1307
    %1351 = vmatpush1.msra.mxu0 %v1306
    %1352 = vmatprep.subr.mxu0 %v1309
    %1353 = vmatpush1.msra.mxu0 %v1308
    %1354 = vmatprep.subr.mxu0 %v1311
    %1355 = vmatpush1.msra.mxu0 %v1310
    %1356 = vmatprep.subr.mxu0 %v1313
    %1357 = vmatpush1.msra.mxu0 %v1312
    %1358 = vmatprep.subr.mxu0 %v1315
    %1359 = vmatpush1.msra.mxu0 %v1314
    %1360 = vmatprep.subr.mxu0 %v1317
    %1361 = vmatpush1.msra.mxu0 %v1316
    %1362 = vmatprep.subr.mxu0 %v1319
    %1363 = vmatpush1.msra.mxu0 %v1318
    %1364 = vmatprep.subr.mxu0 %v1321
    %1365 = vmatpush1.msra.mxu0 %v1320
    %1366 = vmatprep.subr.mxu0 %v1323
    %1367 = vmatpush1.msra.mxu0 %v1322
    %1368 = vmatprep.subr.mxu0 %v1325
    %1369 = vmatpush1.msra.mxu0 %v1324
    %1370 = vmatprep.subr.mxu0 %v1327
    %1371 = vmatpush1.msra.mxu0 %v1326
    %1372 = vmatprep.subr.mxu0 %v1329
    %1373 = vmatpush1.msra.mxu0 %v1328
    %1374 = vmatprep.subr.mxu0 %v1331
    %1375 = vmatpush1.msra.mxu0 %v1330
    %1376 = vmatprep.subr.mxu0 0.0
    %1377 = vmatpush1.msra.mxu0 0.0
    %1378 = vmatprep.subr.mxu0 0.0
    %1379 = vmatpush1.msra.mxu0 0.0
    %1380 = vmatprep.subr.mxu0 0.0
    %1381 = vmatpush1.msra.mxu0 0.0
    %1382 = vmatprep.subr.mxu0 0.0
    %1383 = vmatpush1.msra.mxu0 0.0
    %1384 = vmatprep.subr.mxu0 0.0
    %1385 = vmatpush1.msra.mxu0 0.0
    %1386 = vmatprep.subr.mxu0 0.0
    %1387 = vmatpush1.msra.mxu0 0.0
    %1388 = vmatprep.subr.mxu0 0.0
    %1389 = vmatpush1.msra.mxu0 0.0
    %1390 = vmatprep.subr.mxu0 0.0
    %1391 = vmatpush1.msra.mxu0 0.0
    %1392 = vmatprep.subr.mxu0 0.0
    %1393 = vmatpush1.msra.mxu0 0.0
    %1394 = vmatprep.subr.mxu0 0.0
    %1395 = vmatpush1.msra.mxu0 0.0
    %1396 = vmatprep.subr.mxu0 0.0
    %1397 = vmatpush1.msra.mxu0 0.0
    %1398 = vmatprep.subr.mxu0 0.0
    %1399 = vmatpush1.msra.mxu0 0.0
    %1400 = vmatprep.subr.mxu0 0.0
    %1401 = vmatpush1.msra.mxu0 0.0
    %1402 = vmatprep.subr.mxu0 0.0
    %1403 = vmatpush1.msra.mxu0 0.0
    %1404 = vmatprep.subr.mxu0 0.0
    %1405 = vmatpush1.msra.mxu0 0.0
    %1406 = vmatprep.subr.mxu0 0.0
    %1407 = vmatpush1.msra.mxu0 0.0
    %1408 = vmatprep.mubr.f32.mxu0 0.0
    %1409 = vmatmul.mubr.f32.gmra.mrb[0].mxu0 %v1299
    %v1410 = vpop.f32.mrb[0].mxu0
    %v1411 = vadd.f32 %v1337, %v1410
    %v1412 = vpop.f32.mrb[0].mxu0
    %v1413 = vadd.f32 %v1341, %v1412
    %1414 = vdwg.mxu0
    %v1415 = vand.u32 2147483647, %v1411
    %v1416 = vand.u32 2147483647, %v1413
    %v1417 = vsub.f32 0.0, %v1415
    %v1418 = vsub.f32 0.0, %v1416
    %v1419 = vmul.f32 %v1417, 1.442695
    %v1420 = vpow.pop %v1419
    %v1421 = vmul.f32 %v1418, 1.442695
    %v1422 = vpow.pop %v1421
    %v1423 = vadd.f32 %v1420, 1.0
    %v1424 = vadd.f32 %v1422, 1.0
    %v1425 = vrcp.pop %v1423
    %v1426 = vmul.f32 1.0, %v1425
    %v1427 = vrcp.pop %v1424
    %v1428 = vmul.f32 1.0, %v1427
    %vm1429 = vcmp.ge.f32.partialorder %v1411, 0.0
    %vm1430 = vcmp.ge.f32.partialorder %v1413, 0.0
    %v1431 = vmul.f32 %v1420, %v1426
    %v1432 = vmul.f32 %v1422, %v1428
    %v1433 = vsel %vm1429, %v1426, %v1431
    %v1434 = vsel %vm1430, %v1428, %v1432
    %s1435 = sld [smem:[#allocation16]]
    %v1436 = vstv %s1435
    %v1437 = vmul.f32 %v1433, %v1436
    %s1438 = sld [smem:[#allocation16 + $0x1]]
    %v1439 = vstv %s1438
    %v1440 = vsub.f32 %v1437, %v1439
    %1441 = vst [vmem:[%s11] sm:$0xff] %v1440
    %v1442 = vld [vmem:[%s10] sm:$0x1]
    %v1444 = vlaneseq
    %v1445 = vshrl.u32 %v1444, 7
    %v1446 = vsub.s32 0, %v1445
    %v1447 = vrot.slane %v1442, %v1446
    %v1449 = vmul.f32 %v1434, %v1447
    %v1450 = vadd.f32 %v1449, 1e-08
    %v1451 = vlog2.pop %v1450
    %v1452 = vmul.f32 %v1451, 0.6931472
    %1453 = vst [vmem:[%s11 + $0x8] sm:$0xff] %v1452
    // Predicated region
    $region82: #{encoder_forward.1} parent=1 // pred_check
      _
    $region83: #{encoder_forward.1} parent=1 // pred_check_branch
      %1455 = sbr.rel (0) target = $region85
    $region84: #{encoder_forward.1} parent=1 // pred_region
      _
    $region85: #{encoder_forward.1} parent=1 // pred_fallthru
      _
    // Predicated region
    $region86: #{encoder_forward.1} parent=1 // pred_check
      _
    $region87: #{encoder_forward.1} parent=1 // pred_check_branch
      %1457 = sbr.rel (0) target = $region89
    $region88: #{encoder_forward.1} parent=1 // pred_region
      _
    $region89: #{encoder_forward.1} parent=1 // pred_fallthru
      _
    %1458 = vsyncpa [#allocation3], 1
    %1459 = vsyncpa [#allocation6], 1
    %1460 = vsyncpa [#allocation9], 1
    %1461 = vsyncpa [#allocation12], 1
    %1462 = vsyncpa [#allocation15], 1
    %1463 = vsyncpa [#allocation4], 1

</llo_original>
